<compile_context>
chip_gen: v5e
topology: v5e:2x2
jax: 0.10.0
libtpu: 0.0.40
codegen_flags: <defaults>
</compile_context>

<pallas_src>
import functools
import math

import jax
import jax.numpy as jnp
from jax import lax
from jax.experimental import pallas as pl
from jax.experimental.pallas import tpu as pltpu


NUM_STRUCT = 5  # num_structural_dependencies in SSAN


def ssan_self_attention_kernel(
    x_ref, wqkv_ref, bqkv_ref, bili_ref, smask_ref, amask_ref, abs_bias_ref,
    ctx_ref, *prob_refs, group_size, head_dim, emit_probs,
):
    """One (batch b, head-group h) tile of SSAN biaffine self-attention.

    x_ref:        (1, S, H)                  hidden states for batch b
    wqkv_ref:     (1, H, 3*G*d)              fused, pre-scaled QKV weights for group h
    bqkv_ref:     (1, 1, 3*G*d)              fused, pre-scaled QKV biases for group h
    bili_ref:     (1, G, d, 5*d)             per-head concatenated biaffine tensors
    smask_ref:    (NUM_STRUCT, 1, S, S)      structural masks for batch b (bf16 0/1)
    amask_ref:    (1, 1, S)                  additive attention mask for batch b (f32)
    abs_bias_ref: (NUM_STRUCT, nH)  (SMEM)   abs biases pre-scaled by 1/sqrt(d)
    ctx_ref:      (1, S, G*d)                context columns for group h of (B, S, H)
    prob_refs:    optionally ((1, G, S, S),) attention-prob tile of (B, nH, S, S)
    """
    G, d = group_size, head_dim
    Gd = G * d
    h = pl.program_id(1)  # head-group index

    x = x_ref[0]                       # (S, H), native dtype feeds the MXU
    S = x.shape[0]
    dn = (((1,), (1,)), ((), ()))      # contract last dim of both operands

    # Fused Q/K/V projection: one lane-dense MXU matmul, f32 accumulation.
    qkv = jnp.dot(x, wqkv_ref[0], preferred_element_type=jnp.float32) + bqkv_ref[0]
    q_all = qkv[:, 0 * Gd:1 * Gd].astype(x.dtype)   # pre-scaled by d^-1/4
    k_all = qkv[:, 1 * Gd:2 * Gd].astype(x.dtype)   # pre-scaled by d^-1/4
    v_all = qkv[:, 2 * Gd:3 * Gd].astype(x.dtype)

    # Hoist mask loads/casts out of the per-head loop.
    smasks = [smask_ref[i, 0].astype(jnp.float32) for i in range(NUM_STRUCT)]
    amask = amask_ref[0]               # (1, S), f32, broadcasts over rows

    ctx_parts = []
    for g in range(G):  # static unroll over the heads of this group
        q = q_all[:, g * d:(g + 1) * d]
        k = k_all[:, g * d:(g + 1) * d]
        v = v_all[:, g * d:(g + 1) * d]

        # q @ [bili_0 | ... | bili_4]: one 5d-lane matmul.
        qb = jnp.dot(q, bili_ref[0, g],
                     preferred_element_type=jnp.float32).astype(x.dtype)

        # Row-stack [q, qb_0..qb_4] -> (6S, d); one k^T push serves all 6S rows.
        lhs = jnp.concatenate(
            [q] + [qb[:, i * d:(i + 1) * d] for i in range(NUM_STRUCT)], axis=0)
        big = lax.dot_general(lhs, k, dn, preferred_element_type=jnp.float32)  # (6S, S)

        # scores = q'k'^T + sum_i (q' bili_i k'^T + abs'_i) * mask_i   (all pre-scaled)
        scores = big[0:S]
        for i in range(NUM_STRUCT):
            scores = scores + (big[(i + 1) * S:(i + 2) * S]
                               + abs_bias_ref[i, h * G + g]) * smasks[i]
        scores = scores + amask

        # softmax (f32 epilogue)
        m = jnp.max(scores, axis=-1, keepdims=True)
        p = jnp.exp(scores - m)
        l = jnp.sum(p, axis=-1, keepdims=True)
        # TODO(synk): dropout (eval-mode identity) / head_mask not applied here.

        if emit_probs:
            probs = p / l  # exact divide so returned probs match the reference
            prob_refs[0][0, g] = probs.astype(prob_refs[0].dtype)
            ctx = jnp.dot(probs.astype(x.dtype), v,
                          preferred_element_type=jnp.float32)
        else:
            # Normalize after P@V: (S,d) work instead of (S,S); EUP reciprocal.
            ctx = jnp.dot(p.astype(x.dtype), v,
                          preferred_element_type=jnp.float32)
            ctx = ctx * pl.reciprocal(l, approx=True)
        ctx_parts.append(ctx)

    # One lane-dense (S, G*d) store, already in the final (B, S, H) layout.
    ctx_ref[0] = jnp.concatenate(ctx_parts, axis=1).astype(ctx_ref.dtype)


def _pick_head_group(num_heads, head_dim, target_lanes=256):
    g = max(1, min(num_heads, target_lanes // max(head_dim, 1)))
    while num_heads % g:
        g -= 1
    return g


def ssan_bert_self_attention(hidden_states, params, attention_mask,
                             structure_mask, *, num_heads,
                             output_attentions=True, head_group_lanes=256):
    """hidden_states (B,S,H) -> (context (B,S,H)[, attention_probs (B,nH,S,S)])."""
    B, S, H = hidden_states.shape
    assert H % num_heads == 0
    d = H // num_heads
    dtype = hidden_states.dtype

    G = _pick_head_group(num_heads, d, head_group_lanes)
    nG = num_heads // G
    Gd = G * d

    scale = 1.0 / math.sqrt(d)     # applied to scores in the PyTorch module
    qk_scale = d ** -0.25          # folded into q and k (product = scale)

    # ---- parameter repacking (host side, one-time) --------------------------
    def per_head_cols(w):  # PyTorch (out=H, in=H) -> (H_in, nH, d) columns of x@W^T
        return w.T.reshape(H, num_heads, d)

    wq = per_head_cols(params["q_w"]) * qk_scale
    wk = per_head_cols(params["k_w"]) * qk_scale
    wv = per_head_cols(params["v_w"])
    bq = params["q_b"].reshape(num_heads, d) * qk_scale
    bk = params["k_b"].reshape(num_heads, d) * qk_scale
    bv = params["v_b"].reshape(num_heads, d)

    def group_w(w):  # (H, nH, d) -> (nG, H, G*d)
        return w.reshape(H, nG, G, d).transpose(1, 0, 2, 3).reshape(nG, H, Gd)

    def group_b(b):  # (nH, d) -> (nG, 1, G*d)
        return b.reshape(nG, 1, Gd)

    wqkv = jnp.concatenate([group_w(wq), group_w(wk), group_w(wv)],
                           axis=-1).astype(dtype)                   # (nG, H, 3Gd)
    bqkv = jnp.concatenate([group_b(bq), group_b(bk), group_b(bv)],
                           axis=-1).astype(jnp.float32)             # (nG, 1, 3Gd)

    # bili (5, nH, d, d) -> per head (d, 5d) concat -> (nG, G, d, 5d)
    bili_cat = (params["bili"].transpose(1, 2, 0, 3)
                .reshape(num_heads, d, NUM_STRUCT * d)
                .reshape(nG, G, d, NUM_STRUCT * d).astype(dtype))

    abs_bias = (params["abs_bias"] * scale).astype(jnp.float32)     # (5, nH) SMEM
    smask = structure_mask.astype(jnp.bfloat16)                     # (5, B, S, S)
    amask = attention_mask.reshape(B, 1, S).astype(jnp.float32)     # additive mask

    # ---- cost estimate (advisory) -------------------------------------------
    per_head_flops = (6 * S * H * d                     # share of fused QKV proj
                      + 2 * S * d * NUM_STRUCT * d      # q @ bili_cat
                      + 2 * 6 * S * S * d               # stacked LHS @ k^T
                      + 2 * S * S * d)                  # probs @ v
    flops = B * num_heads * per_head_flops
    isz = jnp.dtype(dtype).itemsize
    bytes_accessed = (nG * hidden_states.size * isz + wqkv.size * isz
                      + bqkv.size * 4 + bili_cat.size * isz * B
                      + num_heads * smask.size * 2 + amask.size * 4
                      + abs_bias.size * 4 + B * S * H * isz
                      + (B * num_heads * S * S * isz if output_attentions else 0))

    kernel = functools.partial(ssan_self_attention_kernel,
                               group_size=G, head_dim=d,
                               emit_probs=output_attentions)

    in_specs = [
        pl.BlockSpec((1, S, H), lambda b, h: (b, 0, 0)),                   # x
        pl.BlockSpec((1, H, 3 * Gd), lambda b, h: (h, 0, 0)),              # W_qkv
        pl.BlockSpec((1, 1, 3 * Gd), lambda b, h: (h, 0, 0)),              # b_qkv
        pl.BlockSpec((1, G, d, NUM_STRUCT * d), lambda b, h: (h, 0, 0, 0)),  # bili
        pl.BlockSpec((NUM_STRUCT, 1, S, S), lambda b, h: (0, b, 0, 0)),    # smask
        pl.BlockSpec((1, 1, S), lambda b, h: (b, 0, 0)),                   # amask
        pl.BlockSpec(memory_space=pltpu.MemorySpace.SMEM),                 # abs_bias
    ]
    ctx_spec = pl.BlockSpec((1, S, Gd), lambda b, h: (b, 0, h))            # (B,S,H)

    if output_attentions:
        out_shape = (jax.ShapeDtypeStruct((B, S, H), dtype),
                     jax.ShapeDtypeStruct((B, num_heads, S, S), dtype))
        out_specs = (ctx_spec,
                     pl.BlockSpec((1, G, S, S), lambda b, h: (b, h, 0, 0)))
    else:
        out_shape = jax.ShapeDtypeStruct((B, S, H), dtype)
        out_specs = ctx_spec

    result = pl.pallas_call(
        kernel,
        out_shape=out_shape,
        grid_spec=pltpu.PrefetchScalarGridSpec(
            num_scalar_prefetch=0,
            grid=(B, nG),
            in_specs=in_specs,
            out_specs=out_specs,
        ),
        # Head-group axis 'arbitrary': megacore splits the batch axis instead,
        # so x / smask / amask (batch-indexed) are not redundantly fetched.
        compiler_params=pltpu.CompilerParams(
            dimension_semantics=("parallel", "arbitrary")),
        cost_estimate=pl.CostEstimate(
            flops=flops,
            transcendentals=B * num_heads * S * S,
            bytes_accessed=int(bytes_accessed)),
    )(hidden_states, wqkv, bqkv, bili_cat, smask, amask, abs_bias)

    if output_attentions:
        context, probs = result
        return context, probs
    return (result,)


def _reference(hidden_states, params, attention_mask, structure_mask, num_heads):
    """Pure-JAX re-implementation of the PyTorch module (biaffine, eval mode)."""
    B, S, H = hidden_states.shape
    d = H // num_heads
    x = hidden_states.astype(jnp.float32)

    def proj(w, b):
        y = x @ w.T.astype(jnp.float32) + b.astype(jnp.float32)
        return y.reshape(B, S, num_heads, d).transpose(0, 2, 1, 3)

    q = proj(params["q_w"], params["q_b"])
    k = proj(params["k_w"], params["k_b"])
    v = proj(params["v_w"], params["v_b"])

    scores = jnp.einsum('bnid,bnjd->bnij', q, k)
    for i in range(NUM_STRUCT):
        bias = jnp.einsum('bnip,npq,bnjq->bnij', q,
                          params["bili"][i].astype(jnp.float32), k)
        scores = scores + (bias + params["abs_bias"][i][None, :, None, None]) \
                          * structure_mask[i][:, None].astype(jnp.float32)
    scores = scores / math.sqrt(d)
    scores = scores + attention_mask.astype(jnp.float32)
    probs = jax.nn.softmax(scores, axis=-1)
    ctx = jnp.einsum('bnij,bnjd->bnid', probs, v)
    ctx = ctx.transpose(0, 2, 1, 3).reshape(B, S, H)
    return ctx.astype(hidden_states.dtype), probs.astype(hidden_states.dtype)


if __name__ == "__main__":
    # small, config-consistent shapes: batch=2, seq=8, hidden=32, heads=4 (d=8)
    B, S, H, NH = 2, 8, 32, 4
    d = H // NH

    key = jax.random.PRNGKey(0)
    keys = jax.random.split(key, 10)

    hidden_states = jax.random.normal(keys[0], (B, S, H), dtype=jnp.float32)

    params = {
        "q_w": 0.05 * jax.random.normal(keys[1], (H, H), dtype=jnp.float32),  # (out,in)
        "q_b": 0.01 * jax.random.normal(keys[2], (H,), dtype=jnp.float32),
        "k_w": 0.05 * jax.random.normal(keys[3], (H, H), dtype=jnp.float32),
        "k_b": 0.01 * jax.random.normal(keys[4], (H,), dtype=jnp.float32),
        "v_w": 0.05 * jax.random.normal(keys[5], (H, H), dtype=jnp.float32),
        "v_b": 0.01 * jax.random.normal(keys[6], (H,), dtype=jnp.float32),
        "bili": 0.1 * jax.random.normal(keys[7], (NUM_STRUCT, NH, d, d),
                                        dtype=jnp.float32),
        "abs_bias": 0.1 * jax.random.normal(keys[8], (NUM_STRUCT, NH),
                                            dtype=jnp.float32),
    }

    # additive attention mask (0 / -10000): mask the last two tokens of batch 1
    pad = jnp.zeros((B, S), dtype=jnp.float32).at[1, -2:].set(-10000.0)
    attention_mask = pad[:, None, None, :]  # (B, 1, 1, S)

    # 5 binary structural-dependency masks, broadcast over heads
    structure_mask = jax.random.bernoulli(
        keys[9], 0.3, (NUM_STRUCT, B, S, S)).astype(jnp.float32)

    # --- probs variant (exact softmax divide, returns attention_probs) -------
    context, probs = ssan_bert_self_attention(
        hidden_states, params, attention_mask, structure_mask,
        num_heads=NH, output_attentions=True)
    jax.block_until_ready((context, probs))

    ref_ctx, ref_probs = _reference(hidden_states, params, attention_mask,
                                    structure_mask, NH)
    assert context.shape == (B, S, H)
    assert probs.shape == (B, NH, S, S)
    assert jnp.allclose(context, ref_ctx, atol=1e-4, rtol=1e-4)
    assert jnp.allclose(probs, ref_probs, atol=1e-4, rtol=1e-4)

    # --- no-probs variant (drops the (B,nH,S,S) HBM stream, approx recip) ----
    (context_np,) = ssan_bert_self_attention(
        hidden_states, params, attention_mask, structure_mask,
        num_heads=NH, output_attentions=False)
    jax.block_until_ready(context_np)
    assert context_np.shape == (B, S, H)
    assert jnp.allclose(context_np, ref_ctx, atol=5e-3, rtol=5e-3)

    print("KERNEL_OK")
</pallas_src>

<mosaic_0001>
module attributes {stable_mosaic.version = 11 : i64} {
  func.func @ssan_self_attention_kernel(%arg0: i32, %arg1: i32, %arg2: memref<1x8x32xf32, #tpu.memory_space<vmem>>, %arg3: memref<1x32x96xf32, #tpu.memory_space<vmem>>, %arg4: memref<1x1x96xf32, #tpu.memory_space<vmem>>, %arg5: memref<1x4x8x40xf32, #tpu.memory_space<vmem>>, %arg6: memref<5x1x8x8xbf16, #tpu.memory_space<vmem>>, %arg7: memref<1x1x8xf32, #tpu.memory_space<vmem>>, %arg8: memref<5x4xf32, #tpu.memory_space<smem>>, %arg9: memref<1x8x32xf32, #tpu.memory_space<vmem>>, %arg10: memref<1x4x8x8xf32, #tpu.memory_space<vmem>>) attributes {dimension_semantics = [#tpu.dimension_semantics<parallel>, #tpu.dimension_semantics<arbitrary>], iteration_bounds = array<i64: 2, 1>, scalar_prefetch = 0 : i64, scratch_operands = 0 : i64, tpu.core_type = #tpu.core_type<tc>, window_params = [{transform_indices = @transform_0, window_bounds = array<i64: 1, 8, 32>}, {transform_indices = @transform_1, window_bounds = array<i64: 1, 32, 96>}, {transform_indices = @transform_2, window_bounds = array<i64: 1, 1, 96>}, {transform_indices = @transform_3, window_bounds = array<i64: 1, 4, 8, 40>}, {transform_indices = @transform_4, window_bounds = array<i64: 5, 1, 8, 8>}, {transform_indices = @transform_5, window_bounds = array<i64: 1, 1, 8>}, {transform_indices = @transform_6, window_bounds = array<i64: 5, 4>}, {transform_indices = @transform_7, window_bounds = array<i64: 1, 8, 32>}, {transform_indices = @transform_8, window_bounds = array<i64: 1, 4, 8, 8>}]} {
    %c0 = arith.constant 0 : index
    %c0_0 = arith.constant 0 : index
    %c0_1 = arith.constant 0 : index
    %0 = vector.load %arg2[%c0, %c0_0, %c0_1] : memref<1x8x32xf32, #tpu.memory_space<vmem>>, vector<1x8x32xf32>
    %1 = vector.shape_cast %0 : vector<1x8x32xf32> to vector<8x32xf32>
    %c0_2 = arith.constant 0 : index
    %c0_3 = arith.constant 0 : index
    %c0_4 = arith.constant 0 : index
    %2 = vector.load %arg3[%c0_2, %c0_3, %c0_4] : memref<1x32x96xf32, #tpu.memory_space<vmem>>, vector<1x32x96xf32>
    %3 = vector.shape_cast %2 : vector<1x32x96xf32> to vector<32x96xf32>
    %cst = arith.constant dense<0.000000e+00> : vector<8x96xf32>
    %4 = tpu.matmul %1, %3, %cst {dimension_numbers = #tpu.dot_dimension_numbers<[1], [0], [0], [1], [0, 0, 1, 1], [], []>} : vector<8x32xf32>, vector<32x96xf32>, vector<8x96xf32> -> vector<8x96xf32>
    %c0_5 = arith.constant 0 : index
    %c0_6 = arith.constant 0 : index
    %c0_7 = arith.constant 0 : index
    %5 = vector.load %arg4[%c0_5, %c0_6, %c0_7] : memref<1x1x96xf32, #tpu.memory_space<vmem>>, vector<1x1x96xf32>
    %6 = vector.shape_cast %5 : vector<1x1x96xf32> to vector<1x96xf32>
    %7 = vector.broadcast %6 : vector<1x96xf32> to vector<8x96xf32>
    %8 = arith.addf %4, %7 : vector<8x96xf32>
    %9 = vector.extract_strided_slice %8 {offsets = [0, 0], sizes = [8, 32], strides = [1, 1]} : vector<8x96xf32> to vector<8x32xf32>
    %10 = vector.extract_strided_slice %8 {offsets = [0, 32], sizes = [8, 32], strides = [1, 1]} : vector<8x96xf32> to vector<8x32xf32>
    %11 = vector.extract_strided_slice %8 {offsets = [0, 64], sizes = [8, 32], strides = [1, 1]} : vector<8x96xf32> to vector<8x32xf32>
    %c0_8 = arith.constant 0 : index
    %c0_9 = arith.constant 0 : index
    %c0_10 = arith.constant 0 : index
    %c0_11 = arith.constant 0 : index
    %12 = vector.load %arg6[%c0_8, %c0_9, %c0_10, %c0_11] : memref<5x1x8x8xbf16, #tpu.memory_space<vmem>>, vector<1x1x8x8xbf16>
    %13 = vector.shape_cast %12 : vector<1x1x8x8xbf16> to vector<8x8xbf16>
    %14 = arith.extf %13 : vector<8x8xbf16> to vector<8x8xf32>
    %c1 = arith.constant 1 : index
    %c0_12 = arith.constant 0 : index
    %c0_13 = arith.constant 0 : index
    %c0_14 = arith.constant 0 : index
    %15 = vector.load %arg6[%c1, %c0_12, %c0_13, %c0_14] : memref<5x1x8x8xbf16, #tpu.memory_space<vmem>>, vector<1x1x8x8xbf16>
    %16 = vector.shape_cast %15 : vector<1x1x8x8xbf16> to vector<8x8xbf16>
    %17 = arith.extf %16 : vector<8x8xbf16> to vector<8x8xf32>
    %c2 = arith.constant 2 : index
    %c0_15 = arith.constant 0 : index
    %c0_16 = arith.constant 0 : index
    %c0_17 = arith.constant 0 : index
    %18 = vector.load %arg6[%c2, %c0_15, %c0_16, %c0_17] : memref<5x1x8x8xbf16, #tpu.memory_space<vmem>>, vector<1x1x8x8xbf16>
    %19 = vector.shape_cast %18 : vector<1x1x8x8xbf16> to vector<8x8xbf16>
    %20 = arith.extf %19 : vector<8x8xbf16> to vector<8x8xf32>
    %c3 = arith.constant 3 : index
    %c0_18 = arith.constant 0 : index
    %c0_19 = arith.constant 0 : index
    %c0_20 = arith.constant 0 : index
    %21 = vector.load %arg6[%c3, %c0_18, %c0_19, %c0_20] : memref<5x1x8x8xbf16, #tpu.memory_space<vmem>>, vector<1x1x8x8xbf16>
    %22 = vector.shape_cast %21 : vector<1x1x8x8xbf16> to vector<8x8xbf16>
    %23 = arith.extf %22 : vector<8x8xbf16> to vector<8x8xf32>
    %c4 = arith.constant 4 : index
    %c0_21 = arith.constant 0 : index
    %c0_22 = arith.constant 0 : index
    %c0_23 = arith.constant 0 : index
    %24 = vector.load %arg6[%c4, %c0_21, %c0_22, %c0_23] : memref<5x1x8x8xbf16, #tpu.memory_space<vmem>>, vector<1x1x8x8xbf16>
    %25 = vector.shape_cast %24 : vector<1x1x8x8xbf16> to vector<8x8xbf16>
    %26 = arith.extf %25 : vector<8x8xbf16> to vector<8x8xf32>
    %c0_24 = arith.constant 0 : index
    %c0_25 = arith.constant 0 : index
    %c0_26 = arith.constant 0 : index
    %27 = vector.load %arg7[%c0_24, %c0_25, %c0_26] : memref<1x1x8xf32, #tpu.memory_space<vmem>>, vector<1x1x8xf32>
    %28 = vector.shape_cast %27 : vector<1x1x8xf32> to vector<1x8xf32>
    %29 = vector.extract_strided_slice %9 {offsets = [0, 0], sizes = [8, 8], strides = [1, 1]} : vector<8x32xf32> to vector<8x8xf32>
    %30 = vector.extract_strided_slice %10 {offsets = [0, 0], sizes = [8, 8], strides = [1, 1]} : vector<8x32xf32> to vector<8x8xf32>
    %31 = vector.extract_strided_slice %11 {offsets = [0, 0], sizes = [8, 8], strides = [1, 1]} : vector<8x32xf32> to vector<8x8xf32>
    %c0_27 = arith.constant 0 : index
    %c0_28 = arith.constant 0 : index
    %c0_29 = arith.constant 0 : index
    %c0_30 = arith.constant 0 : index
    %32 = vector.load %arg5[%c0_27, %c0_28, %c0_29, %c0_30] : memref<1x4x8x40xf32, #tpu.memory_space<vmem>>, vector<1x1x8x40xf32>
    %33 = vector.shape_cast %32 : vector<1x1x8x40xf32> to vector<8x40xf32>
    %cst_31 = arith.constant dense<0.000000e+00> : vector<8x40xf32>
    %34 = tpu.matmul %29, %33, %cst_31 {dimension_numbers = #tpu.dot_dimension_numbers<[1], [0], [0], [1], [0, 0, 1, 1], [], []>} : vector<8x8xf32>, vector<8x40xf32>, vector<8x40xf32> -> vector<8x40xf32>
    %35 = vector.extract_strided_slice %34 {offsets = [0, 0], sizes = [8, 8], strides = [1, 1]} : vector<8x40xf32> to vector<8x8xf32>
    %36 = vector.extract_strided_slice %34 {offsets = [0, 8], sizes = [8, 8], strides = [1, 1]} : vector<8x40xf32> to vector<8x8xf32>
    %37 = vector.extract_strided_slice %34 {offsets = [0, 16], sizes = [8, 8], strides = [1, 1]} : vector<8x40xf32> to vector<8x8xf32>
    %38 = vector.extract_strided_slice %34 {offsets = [0, 24], sizes = [8, 8], strides = [1, 1]} : vector<8x40xf32> to vector<8x8xf32>
    %39 = vector.extract_strided_slice %34 {offsets = [0, 32], sizes = [8, 8], strides = [1, 1]} : vector<8x40xf32> to vector<8x8xf32>
    %40 = tpu.concatenate %29, %35, %36, %37, %38, %39 in 0 : vector<8x8xf32>, vector<8x8xf32>, vector<8x8xf32>, vector<8x8xf32>, vector<8x8xf32>, vector<8x8xf32> -> vector<48x8xf32>
    %cst_32 = arith.constant dense<0.000000e+00> : vector<48x8xf32>
    %41 = tpu.matmul %40, %30, %cst_32 {dimension_numbers = #tpu.dot_dimension_numbers<[1], [1], [0], [0], [0, 0, 1, 0], [], []>} : vector<48x8xf32>, vector<8x8xf32>, vector<48x8xf32> -> vector<48x8xf32>
    %42 = vector.extract_strided_slice %41 {offsets = [0, 0], sizes = [8, 8], strides = [1, 1]} : vector<48x8xf32> to vector<8x8xf32>
    %43 = vector.extract_strided_slice %41 {offsets = [8, 0], sizes = [8, 8], strides = [1, 1]} : vector<48x8xf32> to vector<8x8xf32>
    %c4_i32 = arith.constant 4 : i32
    %44 = arith.muli %arg1, %c4_i32 : i32
    %c0_i32 = arith.constant 0 : i32
    %45 = arith.addi %44, %c0_i32 : i32
    %c0_33 = arith.constant 0 : index
    %46 = arith.index_cast %45 : i32 to index
    %47 = memref.load %arg8[%c0_33, %46] : memref<5x4xf32, #tpu.memory_space<smem>>
    %48 = vector.broadcast %47 : f32 to vector<8x8xf32>
    %49 = arith.addf %43, %48 : vector<8x8xf32>
    %50 = arith.mulf %49, %14 : vector<8x8xf32>
    %51 = arith.addf %42, %50 : vector<8x8xf32>
    %52 = vector.extract_strided_slice %41 {offsets = [16, 0], sizes = [8, 8], strides = [1, 1]} : vector<48x8xf32> to vector<8x8xf32>
    %c4_i32_34 = arith.constant 4 : i32
    %53 = arith.muli %arg1, %c4_i32_34 : i32
    %c0_i32_35 = arith.constant 0 : i32
    %54 = arith.addi %53, %c0_i32_35 : i32
    %c1_36 = arith.constant 1 : index
    %55 = arith.index_cast %54 : i32 to index
    %56 = memref.load %arg8[%c1_36, %55] : memref<5x4xf32, #tpu.memory_space<smem>>
    %57 = vector.broadcast %56 : f32 to vector<8x8xf32>
    %58 = arith.addf %52, %57 : vector<8x8xf32>
    %59 = arith.mulf %58, %17 : vector<8x8xf32>
    %60 = arith.addf %51, %59 : vector<8x8xf32>
    %61 = vector.extract_strided_slice %41 {offsets = [24, 0], sizes = [8, 8], strides = [1, 1]} : vector<48x8xf32> to vector<8x8xf32>
    %c4_i32_37 = arith.constant 4 : i32
    %62 = arith.muli %arg1, %c4_i32_37 : i32
    %c0_i32_38 = arith.constant 0 : i32
    %63 = arith.addi %62, %c0_i32_38 : i32
    %c2_39 = arith.constant 2 : index
    %64 = arith.index_cast %63 : i32 to index
    %65 = memref.load %arg8[%c2_39, %64] : memref<5x4xf32, #tpu.memory_space<smem>>
    %66 = vector.broadcast %65 : f32 to vector<8x8xf32>
    %67 = arith.addf %61, %66 : vector<8x8xf32>
    %68 = arith.mulf %67, %20 : vector<8x8xf32>
    %69 = arith.addf %60, %68 : vector<8x8xf32>
    %70 = vector.extract_strided_slice %41 {offsets = [32, 0], sizes = [8, 8], strides = [1, 1]} : vector<48x8xf32> to vector<8x8xf32>
    %c4_i32_40 = arith.constant 4 : i32
    %71 = arith.muli %arg1, %c4_i32_40 : i32
    %c0_i32_41 = arith.constant 0 : i32
    %72 = arith.addi %71, %c0_i32_41 : i32
    %c3_42 = arith.constant 3 : index
    %73 = arith.index_cast %72 : i32 to index
    %74 = memref.load %arg8[%c3_42, %73] : memref<5x4xf32, #tpu.memory_space<smem>>
    %75 = vector.broadcast %74 : f32 to vector<8x8xf32>
    %76 = arith.addf %70, %75 : vector<8x8xf32>
    %77 = arith.mulf %76, %23 : vector<8x8xf32>
    %78 = arith.addf %69, %77 : vector<8x8xf32>
    %79 = vector.extract_strided_slice %41 {offsets = [40, 0], sizes = [8, 8], strides = [1, 1]} : vector<48x8xf32> to vector<8x8xf32>
    %c4_i32_43 = arith.constant 4 : i32
    %80 = arith.muli %arg1, %c4_i32_43 : i32
    %c0_i32_44 = arith.constant 0 : i32
    %81 = arith.addi %80, %c0_i32_44 : i32
    %c4_45 = arith.constant 4 : index
    %82 = arith.index_cast %81 : i32 to index
    %83 = memref.load %arg8[%c4_45, %82] : memref<5x4xf32, #tpu.memory_space<smem>>
    %84 = vector.broadcast %83 : f32 to vector<8x8xf32>
    %85 = arith.addf %79, %84 : vector<8x8xf32>
    %86 = arith.mulf %85, %26 : vector<8x8xf32>
    %87 = arith.addf %78, %86 : vector<8x8xf32>
    %88 = vector.broadcast %28 : vector<1x8xf32> to vector<8x8xf32>
    %89 = arith.addf %87, %88 : vector<8x8xf32>
    %cst_46 = arith.constant dense<0xFF800000> : vector<8xf32>
    %90 = vector.multi_reduction <maximumf>, %89, %cst_46 [1] : vector<8x8xf32> to vector<8xf32>
    %91 = vector.shape_cast %90 : vector<8xf32> to vector<8x1xf32>
    %92 = vector.broadcast %91 : vector<8x1xf32> to vector<8x8xf32>
    %93 = arith.subf %89, %92 : vector<8x8xf32>
    %94 = math.exp %93 : vector<8x8xf32>
    %cst_47 = arith.constant dense<0.000000e+00> : vector<8xf32>
    %95 = vector.multi_reduction <add>, %94, %cst_47 [1] : vector<8x8xf32> to vector<8xf32>
    %96 = vector.shape_cast %95 : vector<8xf32> to vector<8x1xf32>
    %97 = vector.broadcast %96 : vector<8x1xf32> to vector<8x8xf32>
    %98 = arith.divf %94, %97 : vector<8x8xf32>
    %c0_48 = arith.constant 0 : index
    %c0_49 = arith.constant 0 : index
    %c0_50 = arith.constant 0 : index
    %c0_51 = arith.constant 0 : index
    %99 = vector.load %arg10[%c0_48, %c0_49, %c0_50, %c0_51] : memref<1x4x8x8xf32, #tpu.memory_space<vmem>>, vector<1x1x8x8xf32>
    %100 = vector.shape_cast %99 : vector<1x1x8x8xf32> to vector<8x8xf32>
    %101 = vector.shape_cast %98 : vector<8x8xf32> to vector<1x1x8x8xf32>
    tpu.vector_store %arg10[%c0_48, %c0_49, %c0_50, %c0_51], %101 {strides = array<i32>} : memref<1x4x8x8xf32, #tpu.memory_space<vmem>>, vector<1x1x8x8xf32>,
    %cst_52 = arith.constant dense<0.000000e+00> : vector<8x8xf32>
    %102 = tpu.matmul %98, %31, %cst_52 {dimension_numbers = #tpu.dot_dimension_numbers<[1], [0], [0], [1], [0, 0, 1, 1], [], []>} : vector<8x8xf32>, vector<8x8xf32>, vector<8x8xf32> -> vector<8x8xf32>
    %103 = vector.extract_strided_slice %9 {offsets = [0, 8], sizes = [8, 8], strides = [1, 1]} : vector<8x32xf32> to vector<8x8xf32>
    %104 = vector.extract_strided_slice %10 {offsets = [0, 8], sizes = [8, 8], strides = [1, 1]} : vector<8x32xf32> to vector<8x8xf32>
    %105 = vector.extract_strided_slice %11 {offsets = [0, 8], sizes = [8, 8], strides = [1, 1]} : vector<8x32xf32> to vector<8x8xf32>
    %c0_53 = arith.constant 0 : index
    %c1_54 = arith.constant 1 : index
    %c0_55 = arith.constant 0 : index
    %c0_56 = arith.constant 0 : index
    %106 = vector.load %arg5[%c0_53, %c1_54, %c0_55, %c0_56] : memref<1x4x8x40xf32, #tpu.memory_space<vmem>>, vector<1x1x8x40xf32>
    %107 = vector.shape_cast %106 : vector<1x1x8x40xf32> to vector<8x40xf32>
    %cst_57 = arith.constant dense<0.000000e+00> : vector<8x40xf32>
    %108 = tpu.matmul %103, %107, %cst_57 {dimension_numbers = #tpu.dot_dimension_numbers<[1], [0], [0], [1], [0, 0, 1, 1], [], []>} : vector<8x8xf32>, vector<8x40xf32>, vector<8x40xf32> -> vector<8x40xf32>
    %109 = vector.extract_strided_slice %108 {offsets = [0, 0], sizes = [8, 8], strides = [1, 1]} : vector<8x40xf32> to vector<8x8xf32>
    %110 = vector.extract_strided_slice %108 {offsets = [0, 8], sizes = [8, 8], strides = [1, 1]} : vector<8x40xf32> to vector<8x8xf32>
    %111 = vector.extract_strided_slice %108 {offsets = [0, 16], sizes = [8, 8], strides = [1, 1]} : vector<8x40xf32> to vector<8x8xf32>
    %112 = vector.extract_strided_slice %108 {offsets = [0, 24], sizes = [8, 8], strides = [1, 1]} : vector<8x40xf32> to vector<8x8xf32>
    %113 = vector.extract_strided_slice %108 {offsets = [0, 32], sizes = [8, 8], strides = [1, 1]} : vector<8x40xf32> to vector<8x8xf32>
    %114 = tpu.concatenate %103, %109, %110, %111, %112, %113 in 0 : vector<8x8xf32>, vector<8x8xf32>, vector<8x8xf32>, vector<8x8xf32>, vector<8x8xf32>, vector<8x8xf32> -> vector<48x8xf32>
    %cst_58 = arith.constant dense<0.000000e+00> : vector<48x8xf32>
    %115 = tpu.matmul %114, %104, %cst_58 {dimension_numbers = #tpu.dot_dimension_numbers<[1], [1], [0], [0], [0, 0, 1, 0], [], []>} : vector<48x8xf32>, vector<8x8xf32>, vector<48x8xf32> -> vector<48x8xf32>
    %116 = vector.extract_strided_slice %115 {offsets = [0, 0], sizes = [8, 8], strides = [1, 1]} : vector<48x8xf32> to vector<8x8xf32>
    %117 = vector.extract_strided_slice %115 {offsets = [8, 0], sizes = [8, 8], strides = [1, 1]} : vector<48x8xf32> to vector<8x8xf32>
    %c4_i32_59 = arith.constant 4 : i32
    %118 = arith.muli %arg1, %c4_i32_59 : i32
    %c1_i32 = arith.constant 1 : i32
    %119 = arith.addi %118, %c1_i32 : i32
    %c0_60 = arith.constant 0 : index
    %120 = arith.index_cast %119 : i32 to index
    %121 = memref.load %arg8[%c0_60, %120] : memref<5x4xf32, #tpu.memory_space<smem>>
    %122 = vector.broadcast %121 : f32 to vector<8x8xf32>
    %123 = arith.addf %117, %122 : vector<8x8xf32>
    %124 = arith.mulf %123, %14 : vector<8x8xf32>
    %125 = arith.addf %116, %124 : vector<8x8xf32>
    %126 = vector.extract_strided_slice %115 {offsets = [16, 0], sizes = [8, 8], strides = [1, 1]} : vector<48x8xf32> to vector<8x8xf32>
    %c4_i32_61 = arith.constant 4 : i32
    %127 = arith.muli %arg1, %c4_i32_61 : i32
    %c1_i32_62 = arith.constant 1 : i32
    %128 = arith.addi %127, %c1_i32_62 : i32
    %c1_63 = arith.constant 1 : index
    %129 = arith.index_cast %128 : i32 to index
    %130 = memref.load %arg8[%c1_63, %129] : memref<5x4xf32, #tpu.memory_space<smem>>
    %131 = vector.broadcast %130 : f32 to vector<8x8xf32>
    %132 = arith.addf %126, %131 : vector<8x8xf32>
    %133 = arith.mulf %132, %17 : vector<8x8xf32>
    %134 = arith.addf %125, %133 : vector<8x8xf32>
    %135 = vector.extract_strided_slice %115 {offsets = [24, 0], sizes = [8, 8], strides = [1, 1]} : vector<48x8xf32> to vector<8x8xf32>
    %c4_i32_64 = arith.constant 4 : i32
    %136 = arith.muli %arg1, %c4_i32_64 : i32
    %c1_i32_65 = arith.constant 1 : i32
    %137 = arith.addi %136, %c1_i32_65 : i32
    %c2_66 = arith.constant 2 : index
    %138 = arith.index_cast %137 : i32 to index
    %139 = memref.load %arg8[%c2_66, %138] : memref<5x4xf32, #tpu.memory_space<smem>>
    %140 = vector.broadcast %139 : f32 to vector<8x8xf32>
    %141 = arith.addf %135, %140 : vector<8x8xf32>
    %142 = arith.mulf %141, %20 : vector<8x8xf32>
    %143 = arith.addf %134, %142 : vector<8x8xf32>
    %144 = vector.extract_strided_slice %115 {offsets = [32, 0], sizes = [8, 8], strides = [1, 1]} : vector<48x8xf32> to vector<8x8xf32>
    %c4_i32_67 = arith.constant 4 : i32
    %145 = arith.muli %arg1, %c4_i32_67 : i32
    %c1_i32_68 = arith.constant 1 : i32
    %146 = arith.addi %145, %c1_i32_68 : i32
    %c3_69 = arith.constant 3 : index
    %147 = arith.index_cast %146 : i32 to index
    %148 = memref.load %arg8[%c3_69, %147] : memref<5x4xf32, #tpu.memory_space<smem>>
    %149 = vector.broadcast %148 : f32 to vector<8x8xf32>
    %150 = arith.addf %144, %149 : vector<8x8xf32>
    %151 = arith.mulf %150, %23 : vector<8x8xf32>
    %152 = arith.addf %143, %151 : vector<8x8xf32>
    %153 = vector.extract_strided_slice %115 {offsets = [40, 0], sizes = [8, 8], strides = [1, 1]} : vector<48x8xf32> to vector<8x8xf32>
    %c4_i32_70 = arith.constant 4 : i32
    %154 = arith.muli %arg1, %c4_i32_70 : i32
    %c1_i32_71 = arith.constant 1 : i32
    %155 = arith.addi %154, %c1_i32_71 : i32
    %c4_72 = arith.constant 4 : index
    %156 = arith.index_cast %155 : i32 to index
    %157 = memref.load %arg8[%c4_72, %156] : memref<5x4xf32, #tpu.memory_space<smem>>
    %158 = vector.broadcast %157 : f32 to vector<8x8xf32>
    %159 = arith.addf %153, %158 : vector<8x8xf32>
    %160 = arith.mulf %159, %26 : vector<8x8xf32>
    %161 = arith.addf %152, %160 : vector<8x8xf32>
    %162 = vector.broadcast %28 : vector<1x8xf32> to vector<8x8xf32>
    %163 = arith.addf %161, %162 : vector<8x8xf32>
    %cst_73 = arith.constant dense<0xFF800000> : vector<8xf32>
    %164 = vector.multi_reduction <maximumf>, %163, %cst_73 [1] : vector<8x8xf32> to vector<8xf32>
    %165 = vector.shape_cast %164 : vector<8xf32> to vector<8x1xf32>
    %166 = vector.broadcast %165 : vector<8x1xf32> to vector<8x8xf32>
    %167 = arith.subf %163, %166 : vector<8x8xf32>
    %168 = math.exp %167 : vector<8x8xf32>
    %cst_74 = arith.constant dense<0.000000e+00> : vector<8xf32>
    %169 = vector.multi_reduction <add>, %168, %cst_74 [1] : vector<8x8xf32> to vector<8xf32>
    %170 = vector.shape_cast %169 : vector<8xf32> to vector<8x1xf32>
    %171 = vector.broadcast %170 : vector<8x1xf32> to vector<8x8xf32>
    %172 = arith.divf %168, %171 : vector<8x8xf32>
    %c0_75 = arith.constant 0 : index
    %c1_76 = arith.constant 1 : index
    %c0_77 = arith.constant 0 : index
    %c0_78 = arith.constant 0 : index
    %173 = vector.load %arg10[%c0_75, %c1_76, %c0_77, %c0_78] : memref<1x4x8x8xf32, #tpu.memory_space<vmem>>, vector<1x1x8x8xf32>
    %174 = vector.shape_cast %173 : vector<1x1x8x8xf32> to vector<8x8xf32>
    %175 = vector.shape_cast %172 : vector<8x8xf32> to vector<1x1x8x8xf32>
    tpu.vector_store %arg10[%c0_75, %c1_76, %c0_77, %c0_78], %175 {strides = array<i32>} : memref<1x4x8x8xf32, #tpu.memory_space<vmem>>, vector<1x1x8x8xf32>,
    %cst_79 = arith.constant dense<0.000000e+00> : vector<8x8xf32>
    %176 = tpu.matmul %172, %105, %cst_79 {dimension_numbers = #tpu.dot_dimension_numbers<[1], [0], [0], [1], [0, 0, 1, 1], [], []>} : vector<8x8xf32>, vector<8x8xf32>, vector<8x8xf32> -> vector<8x8xf32>
    %177 = vector.extract_strided_slice %9 {offsets = [0, 16], sizes = [8, 8], strides = [1, 1]} : vector<8x32xf32> to vector<8x8xf32>
    %178 = vector.extract_strided_slice %10 {offsets = [0, 16], sizes = [8, 8], strides = [1, 1]} : vector<8x32xf32> to vector<8x8xf32>
    %179 = vector.extract_strided_slice %11 {offsets = [0, 16], sizes = [8, 8], strides = [1, 1]} : vector<8x32xf32> to vector<8x8xf32>
    %c0_80 = arith.constant 0 : index
    %c2_81 = arith.constant 2 : index
    %c0_82 = arith.constant 0 : index
    %c0_83 = arith.constant 0 : index
    %180 = vector.load %arg5[%c0_80, %c2_81, %c0_82, %c0_83] : memref<1x4x8x40xf32, #tpu.memory_space<vmem>>, vector<1x1x8x40xf32>
    %181 = vector.shape_cast %180 : vector<1x1x8x40xf32> to vector<8x40xf32>
    %cst_84 = arith.constant dense<0.000000e+00> : vector<8x40xf32>
    %182 = tpu.matmul %177, %181, %cst_84 {dimension_numbers = #tpu.dot_dimension_numbers<[1], [0], [0], [1], [0, 0, 1, 1], [], []>} : vector<8x8xf32>, vector<8x40xf32>, vector<8x40xf32> -> vector<8x40xf32>
    %183 = vector.extract_strided_slice %182 {offsets = [0, 0], sizes = [8, 8], strides = [1, 1]} : vector<8x40xf32> to vector<8x8xf32>
    %184 = vector.extract_strided_slice %182 {offsets = [0, 8], sizes = [8, 8], strides = [1, 1]} : vector<8x40xf32> to vector<8x8xf32>
    %185 = vector.extract_strided_slice %182 {offsets = [0, 16], sizes = [8, 8], strides = [1, 1]} : vector<8x40xf32> to vector<8x8xf32>
    %186 = vector.extract_strided_slice %182 {offsets = [0, 24], sizes = [8, 8], strides = [1, 1]} : vector<8x40xf32> to vector<8x8xf32>
    %187 = vector.extract_strided_slice %182 {offsets = [0, 32], sizes = [8, 8], strides = [1, 1]} : vector<8x40xf32> to vector<8x8xf32>
    %188 = tpu.concatenate %177, %183, %184, %185, %186, %187 in 0 : vector<8x8xf32>, vector<8x8xf32>, vector<8x8xf32>, vector<8x8xf32>, vector<8x8xf32>, vector<8x8xf32> -> vector<48x8xf32>
    %cst_85 = arith.constant dense<0.000000e+00> : vector<48x8xf32>
    %189 = tpu.matmul %188, %178, %cst_85 {dimension_numbers = #tpu.dot_dimension_numbers<[1], [1], [0], [0], [0, 0, 1, 0], [], []>} : vector<48x8xf32>, vector<8x8xf32>, vector<48x8xf32> -> vector<48x8xf32>
    %190 = vector.extract_strided_slice %189 {offsets = [0, 0], sizes = [8, 8], strides = [1, 1]} : vector<48x8xf32> to vector<8x8xf32>
    %191 = vector.extract_strided_slice %189 {offsets = [8, 0], sizes = [8, 8], strides = [1, 1]} : vector<48x8xf32> to vector<8x8xf32>
    %c4_i32_86 = arith.constant 4 : i32
    %192 = arith.muli %arg1, %c4_i32_86 : i32
    %c2_i32 = arith.constant 2 : i32
    %193 = arith.addi %192, %c2_i32 : i32
    %c0_87 = arith.constant 0 : index
    %194 = arith.index_cast %193 : i32 to index
    %195 = memref.load %arg8[%c0_87, %194] : memref<5x4xf32, #tpu.memory_space<smem>>
    %196 = vector.broadcast %195 : f32 to vector<8x8xf32>
    %197 = arith.addf %191, %196 : vector<8x8xf32>
    %198 = arith.mulf %197, %14 : vector<8x8xf32>
    %199 = arith.addf %190, %198 : vector<8x8xf32>
    %200 = vector.extract_strided_slice %189 {offsets = [16, 0], sizes = [8, 8], strides = [1, 1]} : vector<48x8xf32> to vector<8x8xf32>
    %c4_i32_88 = arith.constant 4 : i32
    %201 = arith.muli %arg1, %c4_i32_88 : i32
    %c2_i32_89 = arith.constant 2 : i32
    %202 = arith.addi %201, %c2_i32_89 : i32
    %c1_90 = arith.constant 1 : index
    %203 = arith.index_cast %202 : i32 to index
    %204 = memref.load %arg8[%c1_90, %203] : memref<5x4xf32, #tpu.memory_space<smem>>
    %205 = vector.broadcast %204 : f32 to vector<8x8xf32>
    %206 = arith.addf %200, %205 : vector<8x8xf32>
    %207 = arith.mulf %206, %17 : vector<8x8xf32>
    %208 = arith.addf %199, %207 : vector<8x8xf32>
    %209 = vector.extract_strided_slice %189 {offsets = [24, 0], sizes = [8, 8], strides = [1, 1]} : vector<48x8xf32> to vector<8x8xf32>
    %c4_i32_91 = arith.constant 4 : i32
    %210 = arith.muli %arg1, %c4_i32_91 : i32
    %c2_i32_92 = arith.constant 2 : i32
    %211 = arith.addi %210, %c2_i32_92 : i32
    %c2_93 = arith.constant 2 : index
    %212 = arith.index_cast %211 : i32 to index
    %213 = memref.load %arg8[%c2_93, %212] : memref<5x4xf32, #tpu.memory_space<smem>>
    %214 = vector.broadcast %213 : f32 to vector<8x8xf32>
    %215 = arith.addf %209, %214 : vector<8x8xf32>
    %216 = arith.mulf %215, %20 : vector<8x8xf32>
    %217 = arith.addf %208, %216 : vector<8x8xf32>
    %218 = vector.extract_strided_slice %189 {offsets = [32, 0], sizes = [8, 8], strides = [1, 1]} : vector<48x8xf32> to vector<8x8xf32>
    %c4_i32_94 = arith.constant 4 : i32
    %219 = arith.muli %arg1, %c4_i32_94 : i32
    %c2_i32_95 = arith.constant 2 : i32
    %220 = arith.addi %219, %c2_i32_95 : i32
    %c3_96 = arith.constant 3 : index
    %221 = arith.index_cast %220 : i32 to index
    %222 = memref.load %arg8[%c3_96, %221] : memref<5x4xf32, #tpu.memory_space<smem>>
    %223 = vector.broadcast %222 : f32 to vector<8x8xf32>
    %224 = arith.addf %218, %223 : vector<8x8xf32>
    %225 = arith.mulf %224, %23 : vector<8x8xf32>
    %226 = arith.addf %217, %225 : vector<8x8xf32>
    %227 = vector.extract_strided_slice %189 {offsets = [40, 0], sizes = [8, 8], strides = [1, 1]} : vector<48x8xf32> to vector<8x8xf32>
    %c4_i32_97 = arith.constant 4 : i32
    %228 = arith.muli %arg1, %c4_i32_97 : i32
    %c2_i32_98 = arith.constant 2 : i32
    %229 = arith.addi %228, %c2_i32_98 : i32
    %c4_99 = arith.constant 4 : index
    %230 = arith.index_cast %229 : i32 to index
    %231 = memref.load %arg8[%c4_99, %230] : memref<5x4xf32, #tpu.memory_space<smem>>
    %232 = vector.broadcast %231 : f32 to vector<8x8xf32>
    %233 = arith.addf %227, %232 : vector<8x8xf32>
    %234 = arith.mulf %233, %26 : vector<8x8xf32>
    %235 = arith.addf %226, %234 : vector<8x8xf32>
    %236 = vector.broadcast %28 : vector<1x8xf32> to vector<8x8xf32>
    %237 = arith.addf %235, %236 : vector<8x8xf32>
    %cst_100 = arith.constant dense<0xFF800000> : vector<8xf32>
    %238 = vector.multi_reduction <maximumf>, %237, %cst_100 [1] : vector<8x8xf32> to vector<8xf32>
    %239 = vector.shape_cast %238 : vector<8xf32> to vector<8x1xf32>
    %240 = vector.broadcast %239 : vector<8x1xf32> to vector<8x8xf32>
    %241 = arith.subf %237, %240 : vector<8x8xf32>
    %242 = math.exp %241 : vector<8x8xf32>
    %cst_101 = arith.constant dense<0.000000e+00> : vector<8xf32>
    %243 = vector.multi_reduction <add>, %242, %cst_101 [1] : vector<8x8xf32> to vector<8xf32>
    %244 = vector.shape_cast %243 : vector<8xf32> to vector<8x1xf32>
    %245 = vector.broadcast %244 : vector<8x1xf32> to vector<8x8xf32>
    %246 = arith.divf %242, %245 : vector<8x8xf32>
    %c0_102 = arith.constant 0 : index
    %c2_103 = arith.constant 2 : index
    %c0_104 = arith.constant 0 : index
    %c0_105 = arith.constant 0 : index
    %247 = vector.load %arg10[%c0_102, %c2_103, %c0_104, %c0_105] : memref<1x4x8x8xf32, #tpu.memory_space<vmem>>, vector<1x1x8x8xf32>
    %248 = vector.shape_cast %247 : vector<1x1x8x8xf32> to vector<8x8xf32>
    %249 = vector.shape_cast %246 : vector<8x8xf32> to vector<1x1x8x8xf32>
    tpu.vector_store %arg10[%c0_102, %c2_103, %c0_104, %c0_105], %249 {strides = array<i32>} : memref<1x4x8x8xf32, #tpu.memory_space<vmem>>, vector<1x1x8x8xf32>,
    %cst_106 = arith.constant dense<0.000000e+00> : vector<8x8xf32>
    %250 = tpu.matmul %246, %179, %cst_106 {dimension_numbers = #tpu.dot_dimension_numbers<[1], [0], [0], [1], [0, 0, 1, 1], [], []>} : vector<8x8xf32>, vector<8x8xf32>, vector<8x8xf32> -> vector<8x8xf32>
    %251 = vector.extract_strided_slice %9 {offsets = [0, 24], sizes = [8, 8], strides = [1, 1]} : vector<8x32xf32> to vector<8x8xf32>
    %252 = vector.extract_strided_slice %10 {offsets = [0, 24], sizes = [8, 8], strides = [1, 1]} : vector<8x32xf32> to vector<8x8xf32>
    %253 = vector.extract_strided_slice %11 {offsets = [0, 24], sizes = [8, 8], strides = [1, 1]} : vector<8x32xf32> to vector<8x8xf32>
    %c0_107 = arith.constant 0 : index
    %c3_108 = arith.constant 3 : index
    %c0_109 = arith.constant 0 : index
    %c0_110 = arith.constant 0 : index
    %254 = vector.load %arg5[%c0_107, %c3_108, %c0_109, %c0_110] : memref<1x4x8x40xf32, #tpu.memory_space<vmem>>, vector<1x1x8x40xf32>
    %255 = vector.shape_cast %254 : vector<1x1x8x40xf32> to vector<8x40xf32>
    %cst_111 = arith.constant dense<0.000000e+00> : vector<8x40xf32>
    %256 = tpu.matmul %251, %255, %cst_111 {dimension_numbers = #tpu.dot_dimension_numbers<[1], [0], [0], [1], [0, 0, 1, 1], [], []>} : vector<8x8xf32>, vector<8x40xf32>, vector<8x40xf32> -> vector<8x40xf32>
    %257 = vector.extract_strided_slice %256 {offsets = [0, 0], sizes = [8, 8], strides = [1, 1]} : vector<8x40xf32> to vector<8x8xf32>
    %258 = vector.extract_strided_slice %256 {offsets = [0, 8], sizes = [8, 8], strides = [1, 1]} : vector<8x40xf32> to vector<8x8xf32>
    %259 = vector.extract_strided_slice %256 {offsets = [0, 16], sizes = [8, 8], strides = [1, 1]} : vector<8x40xf32> to vector<8x8xf32>
    %260 = vector.extract_strided_slice %256 {offsets = [0, 24], sizes = [8, 8], strides = [1, 1]} : vector<8x40xf32> to vector<8x8xf32>
    %261 = vector.extract_strided_slice %256 {offsets = [0, 32], sizes = [8, 8], strides = [1, 1]} : vector<8x40xf32> to vector<8x8xf32>
    %262 = tpu.concatenate %251, %257, %258, %259, %260, %261 in 0 : vector<8x8xf32>, vector<8x8xf32>, vector<8x8xf32>, vector<8x8xf32>, vector<8x8xf32>, vector<8x8xf32> -> vector<48x8xf32>
    %cst_112 = arith.constant dense<0.000000e+00> : vector<48x8xf32>
    %263 = tpu.matmul %262, %252, %cst_112 {dimension_numbers = #tpu.dot_dimension_numbers<[1], [1], [0], [0], [0, 0, 1, 0], [], []>} : vector<48x8xf32>, vector<8x8xf32>, vector<48x8xf32> -> vector<48x8xf32>
    %264 = vector.extract_strided_slice %263 {offsets = [0, 0], sizes = [8, 8], strides = [1, 1]} : vector<48x8xf32> to vector<8x8xf32>
    %265 = vector.extract_strided_slice %263 {offsets = [8, 0], sizes = [8, 8], strides = [1, 1]} : vector<48x8xf32> to vector<8x8xf32>
    %c4_i32_113 = arith.constant 4 : i32
    %266 = arith.muli %arg1, %c4_i32_113 : i32
    %c3_i32 = arith.constant 3 : i32
    %267 = arith.addi %266, %c3_i32 : i32
    %c0_114 = arith.constant 0 : index
    %268 = arith.index_cast %267 : i32 to index
    %269 = memref.load %arg8[%c0_114, %268] : memref<5x4xf32, #tpu.memory_space<smem>>
    %270 = vector.broadcast %269 : f32 to vector<8x8xf32>
    %271 = arith.addf %265, %270 : vector<8x8xf32>
    %272 = arith.mulf %271, %14 : vector<8x8xf32>
    %273 = arith.addf %264, %272 : vector<8x8xf32>
    %274 = vector.extract_strided_slice %263 {offsets = [16, 0], sizes = [8, 8], strides = [1, 1]} : vector<48x8xf32> to vector<8x8xf32>
    %c4_i32_115 = arith.constant 4 : i32
    %275 = arith.muli %arg1, %c4_i32_115 : i32
    %c3_i32_116 = arith.constant 3 : i32
    %276 = arith.addi %275, %c3_i32_116 : i32
    %c1_117 = arith.constant 1 : index
    %277 = arith.index_cast %276 : i32 to index
    %278 = memref.load %arg8[%c1_117, %277] : memref<5x4xf32, #tpu.memory_space<smem>>
    %279 = vector.broadcast %278 : f32 to vector<8x8xf32>
    %280 = arith.addf %274, %279 : vector<8x8xf32>
    %281 = arith.mulf %280, %17 : vector<8x8xf32>
    %282 = arith.addf %273, %281 : vector<8x8xf32>
    %283 = vector.extract_strided_slice %263 {offsets = [24, 0], sizes = [8, 8], strides = [1, 1]} : vector<48x8xf32> to vector<8x8xf32>
    %c4_i32_118 = arith.constant 4 : i32
    %284 = arith.muli %arg1, %c4_i32_118 : i32
    %c3_i32_119 = arith.constant 3 : i32
    %285 = arith.addi %284, %c3_i32_119 : i32
    %c2_120 = arith.constant 2 : index
    %286 = arith.index_cast %285 : i32 to index
    %287 = memref.load %arg8[%c2_120, %286] : memref<5x4xf32, #tpu.memory_space<smem>>
    %288 = vector.broadcast %287 : f32 to vector<8x8xf32>
    %289 = arith.addf %283, %288 : vector<8x8xf32>
    %290 = arith.mulf %289, %20 : vector<8x8xf32>
    %291 = arith.addf %282, %290 : vector<8x8xf32>
    %292 = vector.extract_strided_slice %263 {offsets = [32, 0], sizes = [8, 8], strides = [1, 1]} : vector<48x8xf32> to vector<8x8xf32>
    %c4_i32_121 = arith.constant 4 : i32
    %293 = arith.muli %arg1, %c4_i32_121 : i32
    %c3_i32_122 = arith.constant 3 : i32
    %294 = arith.addi %293, %c3_i32_122 : i32
    %c3_123 = arith.constant 3 : index
    %295 = arith.index_cast %294 : i32 to index
    %296 = memref.load %arg8[%c3_123, %295] : memref<5x4xf32, #tpu.memory_space<smem>>
    %297 = vector.broadcast %296 : f32 to vector<8x8xf32>
    %298 = arith.addf %292, %297 : vector<8x8xf32>
    %299 = arith.mulf %298, %23 : vector<8x8xf32>
    %300 = arith.addf %291, %299 : vector<8x8xf32>
    %301 = vector.extract_strided_slice %263 {offsets = [40, 0], sizes = [8, 8], strides = [1, 1]} : vector<48x8xf32> to vector<8x8xf32>
    %c4_i32_124 = arith.constant 4 : i32
    %302 = arith.muli %arg1, %c4_i32_124 : i32
    %c3_i32_125 = arith.constant 3 : i32
    %303 = arith.addi %302, %c3_i32_125 : i32
    %c4_126 = arith.constant 4 : index
    %304 = arith.index_cast %303 : i32 to index
    %305 = memref.load %arg8[%c4_126, %304] : memref<5x4xf32, #tpu.memory_space<smem>>
    %306 = vector.broadcast %305 : f32 to vector<8x8xf32>
    %307 = arith.addf %301, %306 : vector<8x8xf32>
    %308 = arith.mulf %307, %26 : vector<8x8xf32>
    %309 = arith.addf %300, %308 : vector<8x8xf32>
    %310 = vector.broadcast %28 : vector<1x8xf32> to vector<8x8xf32>
    %311 = arith.addf %309, %310 : vector<8x8xf32>
    %cst_127 = arith.constant dense<0xFF800000> : vector<8xf32>
    %312 = vector.multi_reduction <maximumf>, %311, %cst_127 [1] : vector<8x8xf32> to vector<8xf32>
    %313 = vector.shape_cast %312 : vector<8xf32> to vector<8x1xf32>
    %314 = vector.broadcast %313 : vector<8x1xf32> to vector<8x8xf32>
    %315 = arith.subf %311, %314 : vector<8x8xf32>
    %316 = math.exp %315 : vector<8x8xf32>
    %cst_128 = arith.constant dense<0.000000e+00> : vector<8xf32>
    %317 = vector.multi_reduction <add>, %316, %cst_128 [1] : vector<8x8xf32> to vector<8xf32>
    %318 = vector.shape_cast %317 : vector<8xf32> to vector<8x1xf32>
    %319 = vector.broadcast %318 : vector<8x1xf32> to vector<8x8xf32>
    %320 = arith.divf %316, %319 : vector<8x8xf32>
    %c0_129 = arith.constant 0 : index
    %c3_130 = arith.constant 3 : index
    %c0_131 = arith.constant 0 : index
    %c0_132 = arith.constant 0 : index
    %321 = vector.load %arg10[%c0_129, %c3_130, %c0_131, %c0_132] : memref<1x4x8x8xf32, #tpu.memory_space<vmem>>, vector<1x1x8x8xf32>
    %322 = vector.shape_cast %321 : vector<1x1x8x8xf32> to vector<8x8xf32>
    %323 = vector.shape_cast %320 : vector<8x8xf32> to vector<1x1x8x8xf32>
    tpu.vector_store %arg10[%c0_129, %c3_130, %c0_131, %c0_132], %323 {strides = array<i32>} : memref<1x4x8x8xf32, #tpu.memory_space<vmem>>, vector<1x1x8x8xf32>,
    %cst_133 = arith.constant dense<0.000000e+00> : vector<8x8xf32>
    %324 = tpu.matmul %320, %253, %cst_133 {dimension_numbers = #tpu.dot_dimension_numbers<[1], [0], [0], [1], [0, 0, 1, 1], [], []>} : vector<8x8xf32>, vector<8x8xf32>, vector<8x8xf32> -> vector<8x8xf32>
    %325 = tpu.concatenate %102, %176, %250, %324 in 1 : vector<8x8xf32>, vector<8x8xf32>, vector<8x8xf32>, vector<8x8xf32> -> vector<8x32xf32>
    %c0_134 = arith.constant 0 : index
    %c0_135 = arith.constant 0 : index
    %c0_136 = arith.constant 0 : index
    %326 = vector.load %arg9[%c0_134, %c0_135, %c0_136] : memref<1x8x32xf32, #tpu.memory_space<vmem>>, vector<1x8x32xf32>
    %327 = vector.shape_cast %326 : vector<1x8x32xf32> to vector<8x32xf32>
    %328 = vector.shape_cast %325 : vector<8x32xf32> to vector<1x8x32xf32>
    tpu.vector_store %arg9[%c0_134, %c0_135, %c0_136], %328 {strides = array<i32>} : memref<1x8x32xf32, #tpu.memory_space<vmem>>, vector<1x8x32xf32>,
    return
  }
  func.func @transform_0(%arg0: i32, %arg1: i32) -> (i32, i32, i32) {
    %c0_i32 = arith.constant 0 : i32
    %c0_i32_0 = arith.constant 0 : i32
    %c0_i32_1 = arith.constant 0 : i32
    return %arg0, %c0_i32, %c0_i32_0 : i32, i32, i32
  }
  func.func @transform_1(%arg0: i32, %arg1: i32) -> (i32, i32, i32) {
    %c0_i32 = arith.constant 0 : i32
    %c0_i32_0 = arith.constant 0 : i32
    %c0_i32_1 = arith.constant 0 : i32
    return %arg1, %c0_i32, %c0_i32_0 : i32, i32, i32
  }
  func.func @transform_2(%arg0: i32, %arg1: i32) -> (i32, i32, i32) {
    %c0_i32 = arith.constant 0 : i32
    %c0_i32_0 = arith.constant 0 : i32
    %c0_i32_1 = arith.constant 0 : i32
    return %arg1, %c0_i32, %c0_i32_0 : i32, i32, i32
  }
  func.func @transform_3(%arg0: i32, %arg1: i32) -> (i32, i32, i32, i32) {
    %c0_i32 = arith.constant 0 : i32
    %c0_i32_0 = arith.constant 0 : i32
    %c0_i32_1 = arith.constant 0 : i32
    %c0_i32_2 = arith.constant 0 : i32
    return %arg1, %c0_i32, %c0_i32_0, %c0_i32_1 : i32, i32, i32, i32
  }
  func.func @transform_4(%arg0: i32, %arg1: i32) -> (i32, i32, i32, i32) {
    %c0_i32 = arith.constant 0 : i32
    %c0_i32_0 = arith.constant 0 : i32
    %c0_i32_1 = arith.constant 0 : i32
    %c0_i32_2 = arith.constant 0 : i32
    return %c0_i32, %arg0, %c0_i32_0, %c0_i32_1 : i32, i32, i32, i32
  }
  func.func @transform_5(%arg0: i32, %arg1: i32) -> (i32, i32, i32) {
    %c0_i32 = arith.constant 0 : i32
    %c0_i32_0 = arith.constant 0 : i32
    %c0_i32_1 = arith.constant 0 : i32
    return %arg0, %c0_i32, %c0_i32_0 : i32, i32, i32
  }
  func.func @transform_6(%arg0: i32, %arg1: i32) -> (i32, i32) {
    %c0_i32 = arith.constant 0 : i32
    %c0_i32_0 = arith.constant 0 : i32
    %c0_i32_1 = arith.constant 0 : i32
    return %c0_i32, %c0_i32_0 : i32, i32
  }
  func.func @transform_7(%arg0: i32, %arg1: i32) -> (i32, i32, i32) {
    %c0_i32 = arith.constant 0 : i32
    %c0_i32_0 = arith.constant 0 : i32
    return %arg0, %c0_i32, %arg1 : i32, i32, i32
  }
  func.func @transform_8(%arg0: i32, %arg1: i32) -> (i32, i32, i32, i32) {
    %c0_i32 = arith.constant 0 : i32
    %c0_i32_0 = arith.constant 0 : i32
    %c0_i32_1 = arith.constant 0 : i32
    return %arg0, %arg1, %c0_i32, %c0_i32_0 : i32, i32, i32, i32
  }
}

</mosaic_0001>

<llo_original>
// kernel: tpu_custom_call.1
$region0: #{tpu_custom_call.1}
  #allocation0 [shape = 'u32[]', space=smem, size = 0x4, offset = 0x4, fixed_abs, tag = 'smem constant byte address 0x4 - core index']
  #allocation1 [shape = 'u32[72,128]{1,0:T(1,128)}', space=vmem, size = 0x9000, scoped, tag = 'internal scratch']
  %s0 = inlined_call_operand.hbm [shape: f32[2,8,32], index: 0, kind: input, shape index: {}]
  %s1 = inlined_call_operand.hbm [shape: f32[1,32,96], index: 1, kind: input, shape index: {}]
  %s2 = inlined_call_operand.vmem [shape: f32[1,1,96], index: 2, kind: input, shape index: {}]
  %s3 = inlined_call_operand.hbm [shape: f32[1,4,8,40], index: 3, kind: input, shape index: {}]
  %s4 = inlined_call_operand.hbm [shape: bf16[5,2,8,8], index: 4, kind: input, shape index: {}]
  %s5 = inlined_call_operand.vmem [shape: f32[2,1,8], index: 5, kind: input, shape index: {}]
  %s6 = inlined_call_operand.vmem [shape: f32[5,4], index: 6, kind: input, shape index: {}]
  %s7 = inlined_call_operand.hbm [shape: f32[2,8,32], index: 7, kind: output, shape index: {0}]
  %s8 = inlined_call_operand.hbm [shape: f32[2,4,8,8], index: 8, kind: output, shape index: {1}]
  %9 = xla_tuple %s7, %s8
  %s10 = sld [smem:[#allocation0]]
  $region89: #{tpu_custom_call.1} parent=0
    _
  %s12 = ssub.s32 1, %s10
  %s13 = scalar_select 0, %s12, %s10
  $region1: #{tpu_custom_call.1} parent=0
    #allocation2 [shape = 'u8[8192]{0}', space=vmem, size = 0x2000, scoped, tag = 'input window, operand 0']
    #allocation3 [shape = 's32[2]{0}', space=sflag, size = 0x8, scoped, tag = 'scoped memory for tpu_custom_call.1']
    #allocation4 [shape = 's32[2]{0}', space=sflag, size = 0x8, scoped, tag = 'scoped memory for tpu_custom_call.1']
    #allocation5 [shape = 's32[2]{0}', space=sflag, size = 0x8, scoped, tag = 'scoped memory for tpu_custom_call.1']
    #allocation6 [shape = 'u8[16384]{0}', space=vmem, size = 0x4000, scoped, tag = 'input window, operand 1, single buffered']
    #allocation7 [shape = 's32[1]{0}', space=sflag, size = 0x4, scoped, tag = 'scoped memory for tpu_custom_call.1']
    #allocation8 [shape = 'u8[16384]{0}', space=vmem, size = 0x4000, scoped, tag = 'input window, operand 3, single buffered']
    #allocation9 [shape = 'u8[20480]{0}', space=vmem, size = 0x5000, scoped, tag = 'input window, operand 4']
    #allocation10 [shape = 's32[2]{0}', space=sflag, size = 0x8, scoped, tag = 'scoped memory for tpu_custom_call.1']
    #allocation11 [shape = 'u8[4096]{0}', space=smem, size = 0x1000, scoped, tag = 'input window, operand 6, single buffered']
    #allocation12 [shape = 'u8[8192]{0}', space=vmem, size = 0x2000, scoped, tag = 'output window, operand 0']
    #allocation13 [shape = 'u8[32768]{0}', space=vmem, size = 0x8000, scoped, tag = 'output window, operand 1']
    #allocation14 [shape = 's32[2]{0}', space=sflag, size = 0x8, scoped, tag = 'scoped memory for tpu_custom_call.1']
    %14 = vsyncpa [#allocation3], 0
    %s15 = scalar_lea.sflag [#allocation3], 1
    %16 = vsyncpa %s15, 0
    %17 = vsyncpa [#allocation7], 0
    %18 = vsyncpa [#allocation10], 0
    %s19 = scalar_lea.sflag [#allocation10], 1
    %20 = vsyncpa %s19, 0
    %21 = vsyncpa [#allocation5], 0
    %22 = vsyncpa [#allocation4], 0
    %s23 = scalar_lea.sflag [#allocation4], 1
    %24 = vsyncpa %s23, 0
    %25 = vsyncpa [#allocation14], 0
    %s26 = scalar_lea.sflag [#allocation14], 1
    %27 = vsyncpa %s26, 0
    loop: start=0, step=1, limit=4
    $region2: #{tpu_custom_call.1} parent=1 // loop_pre_header
      _
    $region3: #{tpu_custom_call.1} parent=1 // loop_header
      %s29 = sphi 0, %s33
      %p30 = scmp.ge.s32.totalorder %s29, 4
      %s36 = sphi 0, %s48
      %s37 = sphi 0, %s44
      %s38 = sphi 0, %s36
      %s39 = sphi 0, %s37
      %s40 = sphi 0, %s38
      %s41 = sphi 0, %s39
      %s51 = sphi 0, %s53
      %s54 = sphi 0, %s51
      %s55 = sphi 0, %s54
      %s71 = sphi 0, %s55
      %s77 = sphi 0, %s79
      %s80 = sphi 0, %s77
      %s81 = sphi 0, %s80
      %s97 = sphi 0, %s81
      %s103 = sphi 0, %s105
      %s106 = sphi 0, %s103
      %s107 = sphi 0, %s106
      %s123 = sphi 0, %s107
      %s129 = sphi 0, %s131
      %s132 = sphi 0, %s129
      %s133 = sphi 0, %s132
      %s149 = sphi 0, %s133
      %s155 = sphi 0, %s157
      %s158 = sphi 0, %s155
      %s159 = sphi 0, %s158
      %s175 = sphi 0, %s159
      %s181 = sphi 0, %s183
      %s184 = sphi 0, %s181
      %s185 = sphi 0, %s184
      %s201 = sphi 0, %s185
      %s205 = sphi 0, %s205
      %s207 = sphi 0, %s205
      %s208 = sphi 0, %s207
      %s222 = sphi 0, %s208
      %s230 = sphi 0, %s232
      %s233 = sphi 0, %s230
      %s234 = sphi 0, %s233
      %s250 = sphi 0, %s234
      %s258 = sphi 0, %s260
      %s261 = sphi 0, %s258
      %s262 = sphi 0, %s261
      %s278 = sphi 0, %s262
    $region4: #{tpu_custom_call.1} parent=1 // loop_header_branch
      %32 = sbr.rel (%p30) target = $region8
    $region5: #{tpu_custom_call.1} parent=1 // loop_body
      %s34 = ssub.s32 %s29, 1
      %s35 = ssub.s32 %s29, 2
      %s42 = sadd.s32 1, %s37
      %p43 = scmp.ge.s32.totalorder %s42, 1
      %s44 = scalar_select %p43, 0, %s42
      %s45 = sadd.s32 1, %s36
      %s46 = scalar_select %p43, %s45, %s36
      %p47 = scmp.ge.s32.totalorder %s46, 2
      %s48 = scalar_select %p47, 0, %s46
      %s49 = ssub.s32 %s36, %s48
      %p50 = scmp.eq.s32.totalorder %s49, 0
      %s52 = sadd.s32 %s51, 1
      %s53 = scalar_select %p50, %s51, %s52
      %p56 = pneg %p50
      %p57 = scmp.eq.s32.totalorder %s29, 1
      %p58 = por %p56, %p57
      %p59 = scmp.ne.s32.totalorder %s51, %s54
      %p60 = scmp.eq.s32.totalorder %s29, 0
      %p61 = por %p59, %p60
      %p62 = scmp.ne.s32.totalorder %s51, %s54
      %p63 = scmp.eq.s32.totalorder %s34, 1
      %p64 = por %p62, %p63
      %p65 = scmp.ne.s32.totalorder %s54, %s55
      %p66 = scmp.eq.s32.totalorder %s34, 0
      %p67 = por %p65, %p66
      %p68 = scmp.ne.s32.totalorder %s54, %s55
      %p69 = scmp.eq.s32.totalorder %s35, 1
      %p70 = por %p68, %p69
      %p72 = scmp.ne.s32.totalorder %s55, %s71
      %p73 = scmp.eq.s32.totalorder %s35, 0
      %p74 = por %p72, %p73
      %s75 = ssub.s32 %s37, %s44
      %p76 = scmp.eq.s32.totalorder %s75, 0
      %s78 = sadd.s32 %s77, 1
      %s79 = scalar_select %p76, %s77, %s78
      %p82 = pneg %p76
      %p83 = scmp.eq.s32.totalorder %s29, 1
      %p84 = por %p82, %p83
      %p85 = scmp.ne.s32.totalorder %s77, %s80
      %p86 = scmp.eq.s32.totalorder %s29, 0
      %p87 = por %p85, %p86
      %p88 = scmp.ne.s32.totalorder %s77, %s80
      %p89 = scmp.eq.s32.totalorder %s34, 1
      %p90 = por %p88, %p89
      %p91 = scmp.ne.s32.totalorder %s80, %s81
      %p92 = scmp.eq.s32.totalorder %s34, 0
      %p93 = por %p91, %p92
      %p94 = scmp.ne.s32.totalorder %s80, %s81
      %p95 = scmp.eq.s32.totalorder %s35, 1
      %p96 = por %p94, %p95
      %p98 = scmp.ne.s32.totalorder %s81, %s97
      %p99 = scmp.eq.s32.totalorder %s35, 0
      %p100 = por %p98, %p99
      %s101 = ssub.s32 %s37, %s44
      %p102 = scmp.eq.s32.totalorder %s101, 0
      %s104 = sadd.s32 %s103, 1
      %s105 = scalar_select %p102, %s103, %s104
      %p108 = pneg %p102
      %p109 = scmp.eq.s32.totalorder %s29, 1
      %p110 = por %p108, %p109
      %p111 = scmp.ne.s32.totalorder %s103, %s106
      %p112 = scmp.eq.s32.totalorder %s29, 0
      %p113 = por %p111, %p112
      %p114 = scmp.ne.s32.totalorder %s103, %s106
      %p115 = scmp.eq.s32.totalorder %s34, 1
      %p116 = por %p114, %p115
      %p117 = scmp.ne.s32.totalorder %s106, %s107
      %p118 = scmp.eq.s32.totalorder %s34, 0
      %p119 = por %p117, %p118
      %p120 = scmp.ne.s32.totalorder %s106, %s107
      %p121 = scmp.eq.s32.totalorder %s35, 1
      %p122 = por %p120, %p121
      %p124 = scmp.ne.s32.totalorder %s107, %s123
      %p125 = scmp.eq.s32.totalorder %s35, 0
      %p126 = por %p124, %p125
      %s127 = ssub.s32 %s37, %s44
      %p128 = scmp.eq.s32.totalorder %s127, 0
      %s130 = sadd.s32 %s129, 1
      %s131 = scalar_select %p128, %s129, %s130
      %p134 = pneg %p128
      %p135 = scmp.eq.s32.totalorder %s29, 1
      %p136 = por %p134, %p135
      %p137 = scmp.ne.s32.totalorder %s129, %s132
      %p138 = scmp.eq.s32.totalorder %s29, 0
      %p139 = por %p137, %p138
      %p140 = scmp.ne.s32.totalorder %s129, %s132
      %p141 = scmp.eq.s32.totalorder %s34, 1
      %p142 = por %p140, %p141
      %p143 = scmp.ne.s32.totalorder %s132, %s133
      %p144 = scmp.eq.s32.totalorder %s34, 0
      %p145 = por %p143, %p144
      %p146 = scmp.ne.s32.totalorder %s132, %s133
      %p147 = scmp.eq.s32.totalorder %s35, 1
      %p148 = por %p146, %p147
      %p150 = scmp.ne.s32.totalorder %s133, %s149
      %p151 = scmp.eq.s32.totalorder %s35, 0
      %p152 = por %p150, %p151
      %s153 = ssub.s32 %s36, %s48
      %p154 = scmp.eq.s32.totalorder %s153, 0
      %s156 = sadd.s32 %s155, 1
      %s157 = scalar_select %p154, %s155, %s156
      %p160 = pneg %p154
      %p161 = scmp.eq.s32.totalorder %s29, 1
      %p162 = por %p160, %p161
      %p163 = scmp.ne.s32.totalorder %s155, %s158
      %p164 = scmp.eq.s32.totalorder %s29, 0
      %p165 = por %p163, %p164
      %p166 = scmp.ne.s32.totalorder %s155, %s158
      %p167 = scmp.eq.s32.totalorder %s34, 1
      %p168 = por %p166, %p167
      %p169 = scmp.ne.s32.totalorder %s158, %s159
      %p170 = scmp.eq.s32.totalorder %s34, 0
      %p171 = por %p169, %p170
      %p172 = scmp.ne.s32.totalorder %s158, %s159
      %p173 = scmp.eq.s32.totalorder %s35, 1
      %p174 = por %p172, %p173
      %p176 = scmp.ne.s32.totalorder %s159, %s175
      %p177 = scmp.eq.s32.totalorder %s35, 0
      %p178 = por %p176, %p177
      %s179 = ssub.s32 %s36, %s48
      %p180 = scmp.eq.s32.totalorder %s179, 0
      %s182 = sadd.s32 %s181, 1
      %s183 = scalar_select %p180, %s181, %s182
      %p186 = pneg %p180
      %p187 = scmp.eq.s32.totalorder %s29, 1
      %p188 = por %p186, %p187
      %p189 = scmp.ne.s32.totalorder %s181, %s184
      %p190 = scmp.eq.s32.totalorder %s29, 0
      %p191 = por %p189, %p190
      %p192 = scmp.ne.s32.totalorder %s181, %s184
      %p193 = scmp.eq.s32.totalorder %s34, 1
      %p194 = por %p192, %p193
      %p195 = scmp.ne.s32.totalorder %s184, %s185
      %p196 = scmp.eq.s32.totalorder %s34, 0
      %p197 = por %p195, %p196
      %p198 = scmp.ne.s32.totalorder %s184, %s185
      %p199 = scmp.eq.s32.totalorder %s35, 1
      %p200 = por %p198, %p199
      %p202 = scmp.ne.s32.totalorder %s185, %s201
      %p203 = scmp.eq.s32.totalorder %s35, 0
      %p204 = por %p202, %p203
      %s206 = sadd.s32 %s205, 1
      %p209 = scmp.eq.s32.totalorder %s29, 1
      %p210 = scmp.ne.s32.totalorder %s205, %s207
      %p211 = scmp.eq.s32.totalorder %s29, 0
      %p212 = por %p210, %p211
      %p213 = scmp.ne.s32.totalorder %s205, %s207
      %p214 = scmp.eq.s32.totalorder %s34, 1
      %p215 = por %p213, %p214
      %p216 = scmp.ne.s32.totalorder %s207, %s208
      %p217 = scmp.eq.s32.totalorder %s34, 0
      %p218 = por %p216, %p217
      %p219 = scmp.ne.s32.totalorder %s207, %s208
      %p220 = scmp.eq.s32.totalorder %s35, 1
      %p221 = por %p219, %p220
      %p223 = scmp.ne.s32.totalorder %s208, %s222
      %p224 = scmp.eq.s32.totalorder %s35, 0
      %p225 = por %p223, %p224
      %s226 = ssub.s32 %s36, %s48
      %s227 = ssub.s32 %s37, %s44
      %s228 = sor.u32 %s226, %s227
      %p229 = scmp.eq.s32.totalorder %s228, 0
      %s231 = sadd.s32 %s230, 1
      %s232 = scalar_select %p229, %s230, %s231
      %p235 = pneg %p229
      %p236 = scmp.eq.s32.totalorder %s29, 1
      %p237 = por %p235, %p236
      %p238 = scmp.ne.s32.totalorder %s230, %s233
      %p239 = scmp.eq.s32.totalorder %s29, 0
      %p240 = por %p238, %p239
      %p241 = scmp.ne.s32.totalorder %s230, %s233
      %p242 = scmp.eq.s32.totalorder %s34, 1
      %p243 = por %p241, %p242
      %p244 = scmp.ne.s32.totalorder %s233, %s234
      %p245 = scmp.eq.s32.totalorder %s34, 0
      %p246 = por %p244, %p245
      %p247 = scmp.ne.s32.totalorder %s233, %s234
      %p248 = scmp.eq.s32.totalorder %s35, 1
      %p249 = por %p247, %p248
      %p251 = scmp.ne.s32.totalorder %s234, %s250
      %p252 = scmp.eq.s32.totalorder %s35, 0
      %p253 = por %p251, %p252
      %s254 = ssub.s32 %s36, %s48
      %s255 = ssub.s32 %s37, %s44
      %s256 = sor.u32 %s254, %s255
      %p257 = scmp.eq.s32.totalorder %s256, 0
      %s259 = sadd.s32 %s258, 1
      %s260 = scalar_select %p257, %s258, %s259
      %p263 = pneg %p257
      %p264 = scmp.eq.s32.totalorder %s29, 1
      %p265 = por %p263, %p264
      %p266 = scmp.ne.s32.totalorder %s258, %s261
      %p267 = scmp.eq.s32.totalorder %s29, 0
      %p268 = por %p266, %p267
      %p269 = scmp.ne.s32.totalorder %s258, %s261
      %p270 = scmp.eq.s32.totalorder %s34, 1
      %p271 = por %p269, %p270
      %p272 = scmp.ne.s32.totalorder %s261, %s262
      %p273 = scmp.eq.s32.totalorder %s34, 0
      %p274 = por %p272, %p273
      %p275 = scmp.ne.s32.totalorder %s261, %s262
      %p276 = scmp.eq.s32.totalorder %s35, 1
      %p277 = por %p275, %p276
      %p279 = scmp.ne.s32.totalorder %s262, %s278
      %p280 = scmp.eq.s32.totalorder %s35, 0
      %p281 = por %p279, %p280
      %p282 = scmp.le.s32.totalorder 1, %s29
      %p283 = scmp.lt.s32.totalorder %s29, 3
      %p284 = pnand %p282, %p283
      %p285 = pneg %p284
      // Predicated region
      $region9: #{tpu_custom_call.1} parent=5 // pred_check
        _
      $region10: #{tpu_custom_call.1} parent=5 // pred_check_branch
        %287 = sbr.rel (%p284) target = $region12
      $region11: #{tpu_custom_call.1} parent=5 // pred_region
        %s288 = ssub.s32 %s29, 1
        // Predicated region
        $region13: #{tpu_custom_call.1} parent=11 // pred_check
          %p289 = pneg %p93
        $region14: #{tpu_custom_call.1} parent=11 // pred_check_branch
          %291 = sbr.rel (%p289) target = $region16
        $region15: #{tpu_custom_call.1} parent=11 // pred_region
          %293 = vsyncadd [#allocation7], 0
          %s294 = smul.addr %s39, 4
          %s295 = smul.addr %s294, 8
          %s296 = scalar_lea.hbm %s1, %s295
          %s297 = sshll.u32 %s296, 4
          %s298 = int_to_ptr.hbm [resolvable:$true] %s297
          %s299 = sshll.u32 [#allocation6], 4
          %s300 = int_to_ptr.vmem [resolvable:$true] %s299
          %305 = dma.hbm_to_vmem [thread:$0]  %s298, 512, %s300, [#allocation7], 128, 128, 8
        $region16: #{tpu_custom_call.1} parent=11 // pred_fallthru
          _
        // Predicated region
        $region17: #{tpu_custom_call.1} parent=11 // pred_check
          %p306 = pneg %p119
        $region18: #{tpu_custom_call.1} parent=11 // pred_check_branch
          %308 = sbr.rel (%p306) target = $region20
        $region19: #{tpu_custom_call.1} parent=11 // pred_region
          %p309 = scmp.lt.s32.totalorder %s39, 0
          %s310 = scalar_select %p309, %s39, 0
          %s311 = scalar_lea.vmem %s2, %s310
        $region20: #{tpu_custom_call.1} parent=11 // pred_fallthru
          _
        // Predicated region
        $region21: #{tpu_custom_call.1} parent=11 // pred_check
          %p312 = pneg %p145
        $region22: #{tpu_custom_call.1} parent=11 // pred_check_branch
          %314 = sbr.rel (%p312) target = $region24
        $region23: #{tpu_custom_call.1} parent=11 // pred_region
          %316 = vsyncadd [#allocation7], 0
          %s317 = smul.addr %s39, 4
          %s318 = smul.addr %s317, 8
          %s319 = scalar_lea.hbm %s3, %s318
          %s320 = sshll.u32 %s319, 4
          %s321 = int_to_ptr.hbm [resolvable:$true] %s320
          %s322 = sshll.u32 [#allocation8], 4
          %s323 = int_to_ptr.vmem [resolvable:$true] %s322
          %328 = dma.hbm_to_vmem [thread:$0]  %s321, 512, %s323, [#allocation7], 128, 128, 8
        $region24: #{tpu_custom_call.1} parent=11 // pred_fallthru
          _
        // Predicated region
        $region25: #{tpu_custom_call.1} parent=11 // pred_check
          %p329 = pneg %p218
        $region26: #{tpu_custom_call.1} parent=11 // pred_check_branch
          %331 = sbr.rel (%p329) target = $region28
        $region27: #{tpu_custom_call.1} parent=11 // pred_region
          %333 = vsyncadd [#allocation5], 0
          %s335 = sshll.u32 %s6, 4
          %s336 = int_to_ptr.vmem [resolvable:$true] %s335
          %338 = dma.vmem_to_smem %s336, 128, [#allocation11], [#allocation5]
        $region28: #{tpu_custom_call.1} parent=11 // pred_fallthru
          _
      $region12: #{tpu_custom_call.1} parent=5 // pred_fallthru
        _
      %p339 = scmp.lt.s32.totalorder %s29, 2
      // Predicated region
      $region29: #{tpu_custom_call.1} parent=5 // pred_check
        %p340 = pneg %p339
      $region30: #{tpu_custom_call.1} parent=5 // pred_check_branch
        %342 = sbr.rel (%p340) target = $region32
      $region31: #{tpu_custom_call.1} parent=5 // pred_region
        // Predicated region
        $region33: #{tpu_custom_call.1} parent=31 // pred_check
          %p343 = pneg %p61
        $region34: #{tpu_custom_call.1} parent=31 // pred_check_branch
          %345 = sbr.rel (%p343) target = $region36
        $region35: #{tpu_custom_call.1} parent=31 // pred_region
          %s346 = sand.u32 %s51, 1
          %s347 = scalar_lea.sflag [#allocation3], %s346
          %s348 = sand.u32 %s51, 1
          %s349 = smul.addr %s348, 8
          %s350 = scalar_lea.vmem [#allocation2], %s349
          %352 = vsyncadd %s347, 0
          %s353 = smul.addr %s36, 8
          %s354 = scalar_lea.hbm %s0, %s353
          %s356 = sshll.u32 %s354, 4
          %s357 = int_to_ptr.hbm [resolvable:$true] %s356
          %s358 = sshll.u32 %s350, 4
          %s359 = int_to_ptr.vmem [resolvable:$true] %s358
          %361 = dma.hbm_to_vmem [thread:$0]  %s357, 128, %s359, %s347
        $region36: #{tpu_custom_call.1} parent=31 // pred_fallthru
          _
        // Predicated region
        $region37: #{tpu_custom_call.1} parent=31 // pred_check
          %p362 = pneg %p165
        $region38: #{tpu_custom_call.1} parent=31 // pred_check_branch
          %364 = sbr.rel (%p362) target = $region40
        $region39: #{tpu_custom_call.1} parent=31 // pred_region
          %s365 = sand.u32 %s155, 1
          %s366 = scalar_lea.sflag [#allocation10], %s365
          %s367 = sand.u32 %s155, 1
          %s368 = smul.addr %s367, 20
          %s369 = scalar_lea.vmem [#allocation9], %s368
          %371 = vsyncadd %s366, 0
          %s372 = smul.addr %s36, 4
          %s373 = scalar_lea.hbm %s4, %s372
          %s374 = sshll.u32 %s373, 4
          %s375 = int_to_ptr.hbm [resolvable:$true] %s374
          %s376 = sshll.u32 %s369, 4
          %s377 = int_to_ptr.vmem [resolvable:$true] %s376
          %382 = dma.hbm_to_vmem [thread:$0]  %s375, 320, %s377, %s366, 128, 64, 4
        $region40: #{tpu_custom_call.1} parent=31 // pred_fallthru
          _
        // Predicated region
        $region41: #{tpu_custom_call.1} parent=31 // pred_check
          %p383 = pneg %p191
        $region42: #{tpu_custom_call.1} parent=31 // pred_check_branch
          %385 = sbr.rel (%p383) target = $region44
        $region43: #{tpu_custom_call.1} parent=31 // pred_region
          %p386 = scmp.lt.s32.totalorder %s36, 1
          %s387 = scalar_select %p386, %s36, 1
          %s388 = scalar_lea.vmem %s5, %s387
        $region44: #{tpu_custom_call.1} parent=31 // pred_fallthru
          _
      $region32: #{tpu_custom_call.1} parent=5 // pred_fallthru
        _
      %p389 = scmp.le.s32.totalorder 1, %s29
      %p390 = scmp.lt.s32.totalorder %s29, 3
      %p391 = pnand %p389, %p390
      %p392 = pneg %p391
      // Predicated region
      $region45: #{tpu_custom_call.1} parent=5 // pred_check
        _
      $region46: #{tpu_custom_call.1} parent=5 // pred_check_branch
        %394 = sbr.rel (%p391) target = $region48
      $region47: #{tpu_custom_call.1} parent=5 // pred_region
        %s395 = ssub.s32 %s29, 1
        %s396 = sand.u32 %s54, 1
        %s397 = scalar_lea.sflag [#allocation3], %s396
        %s398 = sand.u32 %s54, 1
        %s399 = smul.addr %s398, 8
        %s400 = scalar_lea.vmem [#allocation2], %s399
        // Predicated region
        $region49: #{tpu_custom_call.1} parent=47 // pred_check
          %p401 = pneg %p67
        $region50: #{tpu_custom_call.1} parent=47 // pred_check_branch
          %403 = sbr.rel (%p401) target = $region52
        $region51: #{tpu_custom_call.1} parent=47 // pred_region
          %405 = dma.done %s397, 128
        $region52: #{tpu_custom_call.1} parent=47 // pred_fallthru
          _
        // Predicated region
        $region53: #{tpu_custom_call.1} parent=47 // pred_check
          %p406 = pneg %p93
        $region54: #{tpu_custom_call.1} parent=47 // pred_check_branch
          %408 = sbr.rel (%p406) target = $region56
        $region55: #{tpu_custom_call.1} parent=47 // pred_region
          %410 = dma.done [#allocation7], 512
        $region56: #{tpu_custom_call.1} parent=47 // pred_fallthru
          _
        // Predicated region
        $region57: #{tpu_custom_call.1} parent=47 // pred_check
          %p411 = pneg %p145
        $region58: #{tpu_custom_call.1} parent=47 // pred_check_branch
          %413 = sbr.rel (%p411) target = $region60
        $region59: #{tpu_custom_call.1} parent=47 // pred_region
          %415 = dma.done [#allocation7], 512
        $region60: #{tpu_custom_call.1} parent=47 // pred_fallthru
          _
        %s416 = sand.u32 %s158, 1
        %s417 = scalar_lea.sflag [#allocation10], %s416
        %s418 = sand.u32 %s158, 1
        %s419 = smul.addr %s418, 20
        %s420 = scalar_lea.vmem [#allocation9], %s419
        // Predicated region
        $region61: #{tpu_custom_call.1} parent=47 // pred_check
          %p421 = pneg %p171
        $region62: #{tpu_custom_call.1} parent=47 // pred_check_branch
          %423 = sbr.rel (%p421) target = $region64
        $region63: #{tpu_custom_call.1} parent=47 // pred_region
          %425 = dma.done %s417, 320
        $region64: #{tpu_custom_call.1} parent=47 // pred_fallthru
          _
        // Predicated region
        $region65: #{tpu_custom_call.1} parent=47 // pred_check
          %p426 = pneg %p218
        $region66: #{tpu_custom_call.1} parent=47 // pred_check_branch
          %428 = sbr.rel (%p426) target = $region68
        $region67: #{tpu_custom_call.1} parent=47 // pred_region
          %430 = dma.done [#allocation5], 128
        $region68: #{tpu_custom_call.1} parent=47 // pred_fallthru
          _
        %431 = sfence
        %s432 = sand.u32 %s54, 1
        %s433 = scalar_lea.sflag [#allocation3], %s432
        %s434 = sand.u32 %s54, 1
        %s435 = smul.addr %s434, 8
        %s436 = scalar_lea.vmem [#allocation2], %s435
        %p437 = pneg %p67
        %p438 = pneg %p64
        %p439 = pneg %p93
        %p440 = pneg %p90
        %p441 = scmp.lt.s32.totalorder %s39, 0
        %s442 = scalar_select %p441, %s39, 0
        %s443 = scalar_lea.vmem %s2, %s442
        %p444 = pneg %p119
        %p445 = pneg %p116
        %p446 = pneg %p145
        %p447 = pneg %p142
        %s448 = sand.u32 %s158, 1
        %s449 = scalar_lea.sflag [#allocation10], %s448
        %s450 = sand.u32 %s158, 1
        %s451 = smul.addr %s450, 20
        %s452 = scalar_lea.vmem [#allocation9], %s451
        %p453 = pneg %p171
        %p454 = pneg %p168
        %p455 = scmp.lt.s32.totalorder %s38, 1
        %s456 = scalar_select %p455, %s38, 1
        %s457 = scalar_lea.vmem %s5, %s456
        %p458 = pneg %p197
        %p459 = pneg %p194
        %p460 = pneg %p218
        %p461 = pneg %p215
        %p462 = pneg %p246
        %p463 = pneg %p243
        %s464 = sand.u32 %s233, 1
        %s465 = scalar_lea.sflag [#allocation4], %s464
        %s466 = sand.u32 %s233, 1
        %s467 = smul.addr %s466, 8
        %s468 = scalar_lea.vmem [#allocation12], %s467
        %p469 = pneg %p274
        %p470 = pneg %p271
        %s471 = sand.u32 %s261, 1
        %s472 = scalar_lea.sflag [#allocation14], %s471
        %s473 = sand.u32 %s261, 1
        %s474 = smul.addr %s473, 32
        %s475 = scalar_lea.vmem [#allocation13], %s474
        %p476 = scmp.lt.s32.totalorder %s39, 0
        %s477 = scalar_select %p476, %s39, 0
        %s478 = scalar_lea.vmem %s2, %s477
        %p479 = scmp.lt.s32.totalorder %s38, 1
        %s480 = scalar_select %p479, %s38, 1
        %s481 = scalar_lea.vmem %s5, %s480
        %s482 = smul.u32 4, %s39
        %v483 = vld [vmem:[%s400] sm:$0xff]
        %v484 = vld [vmem:[#allocation6] sm:$0xff]
        %v485 = vld [vmem:[#allocation6 + $0x8] sm:$0xff]
        %v486 = vld [vmem:[#allocation6 + $0x10] sm:$0xff]
        %v487 = vld [vmem:[#allocation6 + $0x18] sm:$0xff]
        %v488 = vld [vmem:[%s478] sm:$0x1]
        %v490 = vperm.slane %v488, 0
        %vm492 = vcmask 261120
        %v494 = vsel %vm492, %v483, 0
        %496 = vmatpush.msra.mxu0 0.0
        %497 = vmatpush.msra.mxu0 0.0
        %498 = vmatpush.msra.mxu0 0.0
        %499 = vmatpush.msra.mxu0 0.0
        %500 = vmatpush.msra.mxu0 0.0
        %501 = vmatpush.msra.mxu0 0.0
        %502 = vmatpush.msra.mxu0 0.0
        %503 = vmatpush.msra.mxu0 0.0
        %504 = vmatpush.msra.mxu0 0.0
        %505 = vmatpush.msra.mxu0 0.0
        %506 = vmatpush.msra.mxu0 0.0
        %507 = vmatpush.msra.mxu0 0.0
        %508 = vmatpush.msra.mxu0 %v487
        %509 = vmatpush.msra.mxu0 %v486
        %510 = vmatpush.msra.mxu0 %v485
        %511 = vmatpush.msra.mxu0 %v484
        %512 = vmatmul.f32.gmra.mxu0 %v494
        %v513 = vpop.f32.mrf.mxu0
        %v514 = vadd.f32 %v490, %v513
        %515 = vdwg.mxu0
        %v516 = vld [vmem:[%s420] sm:$0xf]
        %v517 = vunpack.c.l.bf16 %v516
        %s518 = scalar_lea.vmem %s420, 4 [#allocation9]
        %v519 = vld [vmem:[%s518] sm:$0xf]
        %v520 = vunpack.c.l.bf16 %v519
        %s521 = scalar_lea.vmem %s420, 8 [#allocation9]
        %v522 = vld [vmem:[%s521] sm:$0xf]
        %v523 = vunpack.c.l.bf16 %v522
        %s524 = scalar_lea.vmem %s420, 12 [#allocation9]
        %v525 = vld [vmem:[%s524] sm:$0xf]
        %v526 = vunpack.c.l.bf16 %v525
        %s527 = scalar_lea.vmem %s420, 16 [#allocation9]
        %v528 = vld [vmem:[%s527] sm:$0xf]
        %v529 = vunpack.c.l.bf16 %v528
        %v530 = vld [vmem:[%s481] sm:$0x1]
        %v531 = vld [vmem:[#allocation8] sm:$0xff]
        %vm532 = vcmask 64512
        %v534 = vsel %vm532, %v514, 0
        %536 = vmatpush.msra.mxu0 0.0
        %537 = vmatpush.msra.mxu0 0.0
        %538 = vmatpush.msra.mxu0 0.0
        %539 = vmatpush.msra.mxu0 0.0
        %540 = vmatpush.msra.mxu0 0.0
        %541 = vmatpush.msra.mxu0 0.0
        %542 = vmatpush.msra.mxu0 0.0
        %543 = vmatpush.msra.mxu0 0.0
        %544 = vmatpush.msra.mxu0 0.0
        %545 = vmatpush.msra.mxu0 0.0
        %546 = vmatpush.msra.mxu0 0.0
        %547 = vmatpush.msra.mxu0 0.0
        %548 = vmatpush.msra.mxu0 0.0
        %549 = vmatpush.msra.mxu0 0.0
        %550 = vmatpush.msra.mxu0 0.0
        %551 = vmatpush.msra.mxu0 %v531
        %552 = vmatmul.f32.gmra.mxu0 %v534
        %v553 = vpop.f32.mrf.mxu0
        %v554 = vadd.f32 0.0, %v553
        %555 = vdwg.mxu0
        %557 = vrot.lane.b32.xlu0 %v554, 120
        %v558 = vpop.permute.xlu0 %557
        %559 = vrot.lane.b32.xlu0 %v554, 112
        %v560 = vpop.permute.xlu0 %559
        %561 = vrot.lane.b32.xlu0 %v554, 104
        %v562 = vpop.permute.xlu0 %561
        %563 = vrot.lane.b32.xlu0 %v554, 96
        %v564 = vpop.permute.xlu0 %563
        %565 = vrot.lane.b32.xlu0 %v514, 96
        %v566 = vpop.permute.xlu0 %565
        %v567 = vsel %vm532, %v554, 0
        %v569 = vsel %vm532, %v558, 0
        %v571 = vsel %vm532, %v560, 0
        %v573 = vsel %vm532, %v562, 0
        %v575 = vsel %vm532, %v564, 0
        %v577 = vsel %vm532, %v566, 0
        %579 = vmatpush.xpose.msra.mxu0 0.0
        %580 = vmatpush.xpose.msra.mxu0 0.0
        %581 = vmatpush.xpose.msra.mxu0 0.0
        %582 = vmatpush.xpose.msra.mxu0 0.0
        %583 = vmatpush.xpose.msra.mxu0 0.0
        %584 = vmatpush.xpose.msra.mxu0 0.0
        %585 = vmatpush.xpose.msra.mxu0 0.0
        %586 = vmatpush.xpose.msra.mxu0 0.0
        %587 = vmatpush.xpose.msra.mxu0 0.0
        %588 = vmatpush.xpose.msra.mxu0 0.0
        %589 = vmatpush.xpose.msra.mxu0 0.0
        %590 = vmatpush.xpose.msra.mxu0 0.0
        %591 = vmatpush.xpose.msra.mxu0 0.0
        %592 = vmatpush.xpose.msra.mxu0 0.0
        %593 = vmatpush.xpose.msra.mxu0 0.0
        %594 = vmatpush.xpose.msra.mxu0 %v577
        %595 = vmatmul.f32.gmra.mxu0 %v534
        %v596 = vpop.f32.mrf.mxu0
        %v597 = vadd.f32 0.0, %v596
        %598 = vmatmul.f32.gmra.mxu0 %v567
        %v599 = vpop.f32.mrf.mxu0
        %v600 = vadd.f32 0.0, %v599
        %601 = vmatmul.f32.gmra.mxu0 %v569
        %v602 = vpop.f32.mrf.mxu0
        %v603 = vadd.f32 0.0, %v602
        %604 = vmatmul.f32.gmra.mxu0 %v571
        %v605 = vpop.f32.mrf.mxu0
        %v606 = vadd.f32 0.0, %v605
        %607 = vmatmul.f32.gmra.mxu0 %v573
        %v608 = vpop.f32.mrf.mxu0
        %v609 = vadd.f32 0.0, %v608
        %610 = vmatmul.f32.gmra.mxu0 %v575
        %v611 = vpop.f32.mrf.mxu0
        %v612 = vadd.f32 0.0, %v611
        %613 = vdwg.mxu0
        %s614 = smul.u32 %s39, 4
        %s615 = sld [smem:[#allocation11 + %s614]]
        %v616 = vstv %s615
        %v617 = vadd.f32 %v600, %v616
        %v618 = vmul.f32 %v617, %v517
        %v619 = vadd.f32 %v597, %v618
        %s620 = sshra.s32 %s614, 7
        %s621 = sand.u32 %s614, 127
        %s622 = sadd.s32 %s620, 1
        %s623 = smul.u32 %s622, 128
        %s624 = sshra.s32 %s614, 7
        %s625 = sand.u32 %s614, 127
        %s626 = sadd.s32 %s623, %s625
        %s627 = sld [smem:[#allocation11 + %s626]]
        %v628 = vstv %s627
        %v629 = vadd.f32 %v603, %v628
        %v630 = vmul.f32 %v629, %v520
        %v631 = vadd.f32 %v619, %v630
        %s632 = sadd.s32 %s620, 2
        %s633 = smul.u32 %s632, 128
        %s634 = sadd.s32 %s633, %s625
        %s635 = sld [smem:[#allocation11 + %s634]]
        %v636 = vstv %s635
        %v637 = vadd.f32 %v606, %v636
        %v638 = vmul.f32 %v637, %v523
        %v639 = vadd.f32 %v631, %v638
        %s640 = sadd.s32 %s620, 3
        %s641 = smul.u32 %s640, 128
        %s642 = sadd.s32 %s641, %s625
        %s643 = sld [smem:[#allocation11 + %s642]]
        %v644 = vstv %s643
        %v645 = vadd.f32 %v609, %v644
        %v646 = vmul.f32 %v645, %v526
        %v647 = vadd.f32 %v639, %v646
        %s648 = sadd.s32 %s620, 4
        %s649 = smul.u32 %s648, 128
        %s650 = sadd.s32 %s649, %s625
        %s651 = sld [smem:[#allocation11 + %s650]]
        %v652 = vstv %s651
        %v653 = vadd.f32 %v612, %v652
        %v654 = vmul.f32 %v653, %v529
        %v655 = vadd.f32 %v647, %v654
        %v657 = vperm.slane %v530, 0
        %v659 = vadd.f32 %v655, %v657
        %v660 = vsel %vm532, %v659, -inf
        %661 = vmax.xlane.f32.xlu0 %v660
        %v662 = vpop.xlane.xlu0 %661
        %v663 = vsub.f32 %v659, %v662
        %v664 = vmul.f32 %v663, 1.442695
        %v665 = vpow.pop %v664
        %v666 = vsel %vm532, %v665, 0.0
        %667 = vadd.xlane.f32.xlu0 %v666
        %v668 = vpop.xlane.xlu0 %667
        %v669 = vrcp.pop %v668
        %v670 = vmul.f32 %v668, %v669
        %v671 = vsub.f32 1.0, %v670
        %v672 = vmul.f32 %v669, %v671
        %v673 = vadd.f32 %v669, %v672
        %vm674 = vweird.f32 %v668
        %vm675 = vweird.f32 %v669
        %vm676 = vmor %vm674, %vm675
        %v677 = vsel %vm676, %v669, %v673
        %v678 = vand.u32 2147483647, %v668
        %vm679 = vcmp.eq.f32.partialorder %v678, 8.507059e+37
        %v680 = vand.u32 %v668, 2147483648
        %v681 = vor.u32 1.1754944e-38, %v680
        %v682 = vsel %vm679, %v681, %v677
        %v683 = vmul.f32 %v665, %v682
        %684 = vst.msk [vmem:[%s475] sm:$0xff] %vm532, %v683
        %685 = vrot.lane.b32.xlu0 %v514, 64
        %v686 = vpop.permute.xlu0 %685
        %v689 = vsel %vm532, %v683, 0
        %691 = vmatpush.msra.mxu0 0.0
        %692 = vmatpush.msra.mxu0 0.0
        %693 = vmatpush.msra.mxu0 0.0
        %694 = vmatpush.msra.mxu0 0.0
        %695 = vmatpush.msra.mxu0 0.0
        %696 = vmatpush.msra.mxu0 0.0
        %697 = vmatpush.msra.mxu0 0.0
        %698 = vmatpush.msra.mxu0 0.0
        %699 = vmatpush.msra.mxu0 0.0
        %700 = vmatpush.msra.mxu0 0.0
        %701 = vmatpush.msra.mxu0 0.0
        %702 = vmatpush.msra.mxu0 0.0
        %703 = vmatpush.msra.mxu0 0.0
        %704 = vmatpush.msra.mxu0 0.0
        %705 = vmatpush.msra.mxu0 0.0
        %706 = vmatpush.msra.mxu0 %v686
        %707 = vmatmul.f32.gmra.mxu0 %v689
        %v708 = vpop.f32.mrf.mxu0
        %v709 = vadd.f32 0.0, %v708
        %710 = vdwg.mxu0
        %s711 = scalar_lea.vmem [#allocation8], 8
        %v712 = vld [vmem:[%s711] sm:$0xff]
        %713 = vrot.lane.b32.xlu0 %v514, 120
        %v714 = vpop.permute.xlu0 %713
        %v715 = vsel %vm532, %v714, 0
        %717 = vmatpush.msra.mxu0 0.0
        %718 = vmatpush.msra.mxu0 0.0
        %719 = vmatpush.msra.mxu0 0.0
        %720 = vmatpush.msra.mxu0 0.0
        %721 = vmatpush.msra.mxu0 0.0
        %722 = vmatpush.msra.mxu0 0.0
        %723 = vmatpush.msra.mxu0 0.0
        %724 = vmatpush.msra.mxu0 0.0
        %725 = vmatpush.msra.mxu0 0.0
        %726 = vmatpush.msra.mxu0 0.0
        %727 = vmatpush.msra.mxu0 0.0
        %728 = vmatpush.msra.mxu0 0.0
        %729 = vmatpush.msra.mxu0 0.0
        %730 = vmatpush.msra.mxu0 0.0
        %731 = vmatpush.msra.mxu0 0.0
        %732 = vmatpush.msra.mxu0 %v712
        %733 = vmatmul.f32.gmra.mxu0 %v715
        %v734 = vpop.f32.mrf.mxu0
        %v735 = vadd.f32 0.0, %v734
        %736 = vdwg.mxu0
        %738 = vrot.lane.b32.xlu0 %v735, 8
        %v739 = vpop.permute.xlu0 %738
        %740 = vrot.lane.b32.xlu0 %v735, 120
        %v741 = vpop.permute.xlu0 %740
        %742 = vrot.lane.b32.xlu0 %v735, 112
        %v743 = vpop.permute.xlu0 %742
        %744 = vrot.lane.b32.xlu0 %v735, 104
        %v745 = vpop.permute.xlu0 %744
        %746 = vrot.lane.b32.xlu0 %v739, 120
        %v747 = vpop.permute.xlu0 %746
        %748 = vrot.lane.b32.xlu0 %v741, 120
        %v749 = vpop.permute.xlu0 %748
        %750 = vrot.lane.b32.xlu0 %v743, 120
        %v751 = vpop.permute.xlu0 %750
        %752 = vrot.lane.b32.xlu0 %v745, 120
        %v753 = vpop.permute.xlu0 %752
        %754 = vrot.lane.b32.xlu0 %v514, 88
        %v755 = vpop.permute.xlu0 %754
        %v756 = vsel %vm532, %v747, 0
        %v758 = vsel %vm532, %v741, 0
        %v760 = vsel %vm532, %v749, 0
        %v762 = vsel %vm532, %v751, 0
        %v764 = vsel %vm532, %v753, 0
        %v766 = vsel %vm532, %v755, 0
        %768 = vmatpush.xpose.msra.mxu0 0.0
        %769 = vmatpush.xpose.msra.mxu0 0.0
        %770 = vmatpush.xpose.msra.mxu0 0.0
        %771 = vmatpush.xpose.msra.mxu0 0.0
        %772 = vmatpush.xpose.msra.mxu0 0.0
        %773 = vmatpush.xpose.msra.mxu0 0.0
        %774 = vmatpush.xpose.msra.mxu0 0.0
        %775 = vmatpush.xpose.msra.mxu0 0.0
        %776 = vmatpush.xpose.msra.mxu0 0.0
        %777 = vmatpush.xpose.msra.mxu0 0.0
        %778 = vmatpush.xpose.msra.mxu0 0.0
        %779 = vmatpush.xpose.msra.mxu0 0.0
        %780 = vmatpush.xpose.msra.mxu0 0.0
        %781 = vmatpush.xpose.msra.mxu0 0.0
        %782 = vmatpush.xpose.msra.mxu0 0.0
        %783 = vmatpush.xpose.msra.mxu0 %v766
        %784 = vmatmul.f32.gmra.mxu0 %v715
        %v785 = vpop.f32.mrf.mxu0
        %v786 = vadd.f32 0.0, %v785
        %787 = vmatmul.f32.gmra.mxu0 %v756
        %v788 = vpop.f32.mrf.mxu0
        %v789 = vadd.f32 0.0, %v788
        %790 = vmatmul.f32.gmra.mxu0 %v758
        %v791 = vpop.f32.mrf.mxu0
        %v792 = vadd.f32 0.0, %v791
        %793 = vmatmul.f32.gmra.mxu0 %v760
        %v794 = vpop.f32.mrf.mxu0
        %v795 = vadd.f32 0.0, %v794
        %796 = vmatmul.f32.gmra.mxu0 %v762
        %v797 = vpop.f32.mrf.mxu0
        %v798 = vadd.f32 0.0, %v797
        %799 = vmatmul.f32.gmra.mxu0 %v764
        %v800 = vpop.f32.mrf.mxu0
        %v801 = vadd.f32 0.0, %v800
        %802 = vdwg.mxu0
        %s803 = sadd.s32 %s614, 1
        %s804 = sld [smem:[#allocation11 + %s803]]
        %v805 = vstv %s804
        %v806 = vadd.f32 %v789, %v805
        %v807 = vmul.f32 %v806, %v517
        %v808 = vadd.f32 %v786, %v807
        %s809 = sshra.s32 %s803, 7
        %s810 = sand.u32 %s803, 127
        %s811 = sadd.s32 %s809, 1
        %s812 = smul.u32 %s811, 128
        %s813 = sshra.s32 %s803, 7
        %s814 = sand.u32 %s803, 127
        %s815 = sadd.s32 %s812, %s814
        %s816 = sld [smem:[#allocation11 + %s815]]
        %v817 = vstv %s816
        %v818 = vadd.f32 %v792, %v817
        %v819 = vmul.f32 %v818, %v520
        %v820 = vadd.f32 %v808, %v819
        %s821 = sadd.s32 %s809, 2
        %s822 = smul.u32 %s821, 128
        %s823 = sadd.s32 %s822, %s814
        %s824 = sld [smem:[#allocation11 + %s823]]
        %v825 = vstv %s824
        %v826 = vadd.f32 %v795, %v825
        %v827 = vmul.f32 %v826, %v523
        %v828 = vadd.f32 %v820, %v827
        %s829 = sadd.s32 %s809, 3
        %s830 = smul.u32 %s829, 128
        %s831 = sadd.s32 %s830, %s814
        %s832 = sld [smem:[#allocation11 + %s831]]
        %v833 = vstv %s832
        %v834 = vadd.f32 %v798, %v833
        %v835 = vmul.f32 %v834, %v526
        %v836 = vadd.f32 %v828, %v835
        %s837 = sadd.s32 %s809, 4
        %s838 = smul.u32 %s837, 128
        %s839 = sadd.s32 %s838, %s814
        %s840 = sld [smem:[#allocation11 + %s839]]
        %v841 = vstv %s840
        %v842 = vadd.f32 %v801, %v841
        %v843 = vmul.f32 %v842, %v529
        %v844 = vadd.f32 %v836, %v843
        %v845 = vadd.f32 %v844, %v657
        %v846 = vsel %vm532, %v845, -inf
        %847 = vmax.xlane.f32.xlu0 %v846
        %v848 = vpop.xlane.xlu0 %847
        %v849 = vsub.f32 %v845, %v848
        %v850 = vmul.f32 %v849, 1.442695
        %v851 = vpow.pop %v850
        %v852 = vsel %vm532, %v851, 0.0
        %853 = vadd.xlane.f32.xlu0 %v852
        %v854 = vpop.xlane.xlu0 %853
        %v855 = vrcp.pop %v854
        %v856 = vmul.f32 %v854, %v855
        %v857 = vsub.f32 1.0, %v856
        %v858 = vmul.f32 %v855, %v857
        %v859 = vadd.f32 %v855, %v858
        %vm860 = vweird.f32 %v854
        %vm861 = vweird.f32 %v855
        %vm862 = vmor %vm860, %vm861
        %v863 = vsel %vm862, %v855, %v859
        %v864 = vand.u32 2147483647, %v854
        %vm865 = vcmp.eq.f32.partialorder %v864, 8.507059e+37
        %v866 = vand.u32 %v854, 2147483648
        %v867 = vor.u32 1.1754944e-38, %v866
        %v868 = vsel %vm865, %v867, %v863
        %v869 = vmul.f32 %v851, %v868
        %s870 = scalar_lea.vmem %s475, 8 [#allocation13]
        %871 = vst.msk [vmem:[%s870] sm:$0xff] %vm532, %v869
        %872 = vrot.lane.b32.xlu0 %v514, 56
        %v873 = vpop.permute.xlu0 %872
        %v876 = vsel %vm532, %v869, 0
        %878 = vmatpush.msra.mxu0 0.0
        %879 = vmatpush.msra.mxu0 0.0
        %880 = vmatpush.msra.mxu0 0.0
        %881 = vmatpush.msra.mxu0 0.0
        %882 = vmatpush.msra.mxu0 0.0
        %883 = vmatpush.msra.mxu0 0.0
        %884 = vmatpush.msra.mxu0 0.0
        %885 = vmatpush.msra.mxu0 0.0
        %886 = vmatpush.msra.mxu0 0.0
        %887 = vmatpush.msra.mxu0 0.0
        %888 = vmatpush.msra.mxu0 0.0
        %889 = vmatpush.msra.mxu0 0.0
        %890 = vmatpush.msra.mxu0 0.0
        %891 = vmatpush.msra.mxu0 0.0
        %892 = vmatpush.msra.mxu0 0.0
        %893 = vmatpush.msra.mxu0 %v873
        %894 = vmatmul.f32.gmra.mxu0 %v876
        %v895 = vpop.f32.mrf.mxu0
        %v896 = vadd.f32 0.0, %v895
        %897 = vdwg.mxu0
        %s898 = scalar_lea.vmem [#allocation8], 16
        %v899 = vld [vmem:[%s898] sm:$0xff]
        %900 = vrot.lane.b32.xlu0 %v514, 112
        %v901 = vpop.permute.xlu0 %900
        %v902 = vsel %vm532, %v901, 0
        %904 = vmatpush.msra.mxu0 0.0
        %905 = vmatpush.msra.mxu0 0.0
        %906 = vmatpush.msra.mxu0 0.0
        %907 = vmatpush.msra.mxu0 0.0
        %908 = vmatpush.msra.mxu0 0.0
        %909 = vmatpush.msra.mxu0 0.0
        %910 = vmatpush.msra.mxu0 0.0
        %911 = vmatpush.msra.mxu0 0.0
        %912 = vmatpush.msra.mxu0 0.0
        %913 = vmatpush.msra.mxu0 0.0
        %914 = vmatpush.msra.mxu0 0.0
        %915 = vmatpush.msra.mxu0 0.0
        %916 = vmatpush.msra.mxu0 0.0
        %917 = vmatpush.msra.mxu0 0.0
        %918 = vmatpush.msra.mxu0 0.0
        %919 = vmatpush.msra.mxu0 %v899
        %920 = vmatmul.f32.gmra.mxu0 %v902
        %v921 = vpop.f32.mrf.mxu0
        %v922 = vadd.f32 0.0, %v921
        %923 = vdwg.mxu0
        %925 = vrot.lane.b32.xlu0 %v922, 16
        %v926 = vpop.permute.xlu0 %925
        %927 = vrot.lane.b32.xlu0 %v922, 8
        %v928 = vpop.permute.xlu0 %927
        %929 = vrot.lane.b32.xlu0 %v922, 120
        %v930 = vpop.permute.xlu0 %929
        %931 = vrot.lane.b32.xlu0 %v922, 112
        %v932 = vpop.permute.xlu0 %931
        %933 = vrot.lane.b32.xlu0 %v926, 112
        %v934 = vpop.permute.xlu0 %933
        %935 = vrot.lane.b32.xlu0 %v928, 112
        %v936 = vpop.permute.xlu0 %935
        %937 = vrot.lane.b32.xlu0 %v930, 112
        %v938 = vpop.permute.xlu0 %937
        %939 = vrot.lane.b32.xlu0 %v932, 112
        %v940 = vpop.permute.xlu0 %939
        %941 = vrot.lane.b32.xlu0 %v514, 80
        %v942 = vpop.permute.xlu0 %941
        %v943 = vsel %vm532, %v934, 0
        %v945 = vsel %vm532, %v936, 0
        %v947 = vsel %vm532, %v932, 0
        %v949 = vsel %vm532, %v938, 0
        %v951 = vsel %vm532, %v940, 0
        %v953 = vsel %vm532, %v942, 0
        %955 = vmatpush.xpose.msra.mxu0 0.0
        %956 = vmatpush.xpose.msra.mxu0 0.0
        %957 = vmatpush.xpose.msra.mxu0 0.0
        %958 = vmatpush.xpose.msra.mxu0 0.0
        %959 = vmatpush.xpose.msra.mxu0 0.0
        %960 = vmatpush.xpose.msra.mxu0 0.0
        %961 = vmatpush.xpose.msra.mxu0 0.0
        %962 = vmatpush.xpose.msra.mxu0 0.0
        %963 = vmatpush.xpose.msra.mxu0 0.0
        %964 = vmatpush.xpose.msra.mxu0 0.0
        %965 = vmatpush.xpose.msra.mxu0 0.0
        %966 = vmatpush.xpose.msra.mxu0 0.0
        %967 = vmatpush.xpose.msra.mxu0 0.0
        %968 = vmatpush.xpose.msra.mxu0 0.0
        %969 = vmatpush.xpose.msra.mxu0 0.0
        %970 = vmatpush.xpose.msra.mxu0 %v953
        %971 = vmatmul.f32.gmra.mxu0 %v902
        %v972 = vpop.f32.mrf.mxu0
        %v973 = vadd.f32 0.0, %v972
        %974 = vmatmul.f32.gmra.mxu0 %v943
        %v975 = vpop.f32.mrf.mxu0
        %v976 = vadd.f32 0.0, %v975
        %977 = vmatmul.f32.gmra.mxu0 %v945
        %v978 = vpop.f32.mrf.mxu0
        %v979 = vadd.f32 0.0, %v978
        %980 = vmatmul.f32.gmra.mxu0 %v947
        %v981 = vpop.f32.mrf.mxu0
        %v982 = vadd.f32 0.0, %v981
        %983 = vmatmul.f32.gmra.mxu0 %v949
        %v984 = vpop.f32.mrf.mxu0
        %v985 = vadd.f32 0.0, %v984
        %986 = vmatmul.f32.gmra.mxu0 %v951
        %v987 = vpop.f32.mrf.mxu0
        %v988 = vadd.f32 0.0, %v987
        %989 = vdwg.mxu0
        %s990 = sadd.s32 %s614, 2
        %s991 = sld [smem:[#allocation11 + %s990]]
        %v992 = vstv %s991
        %v993 = vadd.f32 %v976, %v992
        %v994 = vmul.f32 %v993, %v517
        %v995 = vadd.f32 %v973, %v994
        %s996 = sshra.s32 %s990, 7
        %s997 = sand.u32 %s990, 127
        %s998 = sadd.s32 %s996, 1
        %s999 = smul.u32 %s998, 128
        %s1000 = sshra.s32 %s990, 7
        %s1001 = sand.u32 %s990, 127
        %s1002 = sadd.s32 %s999, %s1001
        %s1003 = sld [smem:[#allocation11 + %s1002]]
        %v1004 = vstv %s1003
        %v1005 = vadd.f32 %v979, %v1004
        %v1006 = vmul.f32 %v1005, %v520
        %v1007 = vadd.f32 %v995, %v1006
        %s1008 = sadd.s32 %s996, 2
        %s1009 = smul.u32 %s1008, 128
        %s1010 = sadd.s32 %s1009, %s1001
        %s1011 = sld [smem:[#allocation11 + %s1010]]
        %v1012 = vstv %s1011
        %v1013 = vadd.f32 %v982, %v1012
        %v1014 = vmul.f32 %v1013, %v523
        %v1015 = vadd.f32 %v1007, %v1014
        %s1016 = sadd.s32 %s996, 3
        %s1017 = smul.u32 %s1016, 128
        %s1018 = sadd.s32 %s1017, %s1001
        %s1019 = sld [smem:[#allocation11 + %s1018]]
        %v1020 = vstv %s1019
        %v1021 = vadd.f32 %v985, %v1020
        %v1022 = vmul.f32 %v1021, %v526
        %v1023 = vadd.f32 %v1015, %v1022
        %s1024 = sadd.s32 %s996, 4
        %s1025 = smul.u32 %s1024, 128
        %s1026 = sadd.s32 %s1025, %s1001
        %s1027 = sld [smem:[#allocation11 + %s1026]]
        %v1028 = vstv %s1027
        %v1029 = vadd.f32 %v988, %v1028
        %v1030 = vmul.f32 %v1029, %v529
        %v1031 = vadd.f32 %v1023, %v1030
        %v1032 = vadd.f32 %v1031, %v657
        %v1033 = vsel %vm532, %v1032, -inf
        %1034 = vmax.xlane.f32.xlu0 %v1033
        %v1035 = vpop.xlane.xlu0 %1034
        %v1036 = vsub.f32 %v1032, %v1035
        %v1037 = vmul.f32 %v1036, 1.442695
        %v1038 = vpow.pop %v1037
        %v1039 = vsel %vm532, %v1038, 0.0
        %1040 = vadd.xlane.f32.xlu0 %v1039
        %v1041 = vpop.xlane.xlu0 %1040
        %v1042 = vrcp.pop %v1041
        %v1043 = vmul.f32 %v1041, %v1042
        %v1044 = vsub.f32 1.0, %v1043
        %v1045 = vmul.f32 %v1042, %v1044
        %v1046 = vadd.f32 %v1042, %v1045
        %vm1047 = vweird.f32 %v1041
        %vm1048 = vweird.f32 %v1042
        %vm1049 = vmor %vm1047, %vm1048
        %v1050 = vsel %vm1049, %v1042, %v1046
        %v1051 = vand.u32 2147483647, %v1041
        %vm1052 = vcmp.eq.f32.partialorder %v1051, 8.507059e+37
        %v1053 = vand.u32 %v1041, 2147483648
        %v1054 = vor.u32 1.1754944e-38, %v1053
        %v1055 = vsel %vm1052, %v1054, %v1050
        %v1056 = vmul.f32 %v1038, %v1055
        %s1057 = scalar_lea.vmem %s475, 16 [#allocation13]
        %1058 = vst.msk [vmem:[%s1057] sm:$0xff] %vm532, %v1056
        %1059 = vrot.lane.b32.xlu0 %v514, 48
        %v1060 = vpop.permute.xlu0 %1059
        %v1063 = vsel %vm532, %v1056, 0
        %1065 = vmatpush.msra.mxu0 0.0
        %1066 = vmatpush.msra.mxu0 0.0
        %1067 = vmatpush.msra.mxu0 0.0
        %1068 = vmatpush.msra.mxu0 0.0
        %1069 = vmatpush.msra.mxu0 0.0
        %1070 = vmatpush.msra.mxu0 0.0
        %1071 = vmatpush.msra.mxu0 0.0
        %1072 = vmatpush.msra.mxu0 0.0
        %1073 = vmatpush.msra.mxu0 0.0
        %1074 = vmatpush.msra.mxu0 0.0
        %1075 = vmatpush.msra.mxu0 0.0
        %1076 = vmatpush.msra.mxu0 0.0
        %1077 = vmatpush.msra.mxu0 0.0
        %1078 = vmatpush.msra.mxu0 0.0
        %1079 = vmatpush.msra.mxu0 0.0
        %1080 = vmatpush.msra.mxu0 %v1060
        %1081 = vmatmul.f32.gmra.mxu0 %v1063
        %v1082 = vpop.f32.mrf.mxu0
        %v1083 = vadd.f32 0.0, %v1082
        %1084 = vdwg.mxu0
        %s1085 = scalar_lea.vmem [#allocation8], 24
        %v1086 = vld [vmem:[%s1085] sm:$0xff]
        %1087 = vrot.lane.b32.xlu0 %v514, 104
        %v1088 = vpop.permute.xlu0 %1087
        %v1089 = vsel %vm532, %v1088, 0
        %1091 = vmatpush.msra.mxu0 0.0
        %1092 = vmatpush.msra.mxu0 0.0
        %1093 = vmatpush.msra.mxu0 0.0
        %1094 = vmatpush.msra.mxu0 0.0
        %1095 = vmatpush.msra.mxu0 0.0
        %1096 = vmatpush.msra.mxu0 0.0
        %1097 = vmatpush.msra.mxu0 0.0
        %1098 = vmatpush.msra.mxu0 0.0
        %1099 = vmatpush.msra.mxu0 0.0
        %1100 = vmatpush.msra.mxu0 0.0
        %1101 = vmatpush.msra.mxu0 0.0
        %1102 = vmatpush.msra.mxu0 0.0
        %1103 = vmatpush.msra.mxu0 0.0
        %1104 = vmatpush.msra.mxu0 0.0
        %1105 = vmatpush.msra.mxu0 0.0
        %1106 = vmatpush.msra.mxu0 %v1086
        %1107 = vmatmul.f32.gmra.mxu0 %v1089
        %v1108 = vpop.f32.mrf.mxu0
        %v1109 = vadd.f32 0.0, %v1108
        %1110 = vdwg.mxu0
        %1112 = vrot.lane.b32.xlu0 %v1109, 24
        %v1113 = vpop.permute.xlu0 %1112
        %1114 = vrot.lane.b32.xlu0 %v1109, 16
        %v1115 = vpop.permute.xlu0 %1114
        %1116 = vrot.lane.b32.xlu0 %v1109, 8
        %v1117 = vpop.permute.xlu0 %1116
        %1118 = vrot.lane.b32.xlu0 %v1109, 120
        %v1119 = vpop.permute.xlu0 %1118
        %1120 = vrot.lane.b32.xlu0 %v1113, 104
        %v1121 = vpop.permute.xlu0 %1120
        %1122 = vrot.lane.b32.xlu0 %v1115, 104
        %v1123 = vpop.permute.xlu0 %1122
        %1124 = vrot.lane.b32.xlu0 %v1117, 104
        %v1125 = vpop.permute.xlu0 %1124
        %1126 = vrot.lane.b32.xlu0 %v1109, 104
        %v1127 = vpop.permute.xlu0 %1126
        %1128 = vrot.lane.b32.xlu0 %v1119, 104
        %v1129 = vpop.permute.xlu0 %1128
        %1130 = vrot.lane.b32.xlu0 %v514, 72
        %v1131 = vpop.permute.xlu0 %1130
        %v1132 = vsel %vm532, %v1121, 0
        %v1134 = vsel %vm532, %v1123, 0
        %v1136 = vsel %vm532, %v1125, 0
        %v1138 = vsel %vm532, %v1127, 0
        %v1140 = vsel %vm532, %v1129, 0
        %v1142 = vsel %vm532, %v1131, 0
        %1144 = vmatpush.xpose.msra.mxu0 0.0
        %1145 = vmatpush.xpose.msra.mxu0 0.0
        %1146 = vmatpush.xpose.msra.mxu0 0.0
        %1147 = vmatpush.xpose.msra.mxu0 0.0
        %1148 = vmatpush.xpose.msra.mxu0 0.0
        %1149 = vmatpush.xpose.msra.mxu0 0.0
        %1150 = vmatpush.xpose.msra.mxu0 0.0
        %1151 = vmatpush.xpose.msra.mxu0 0.0
        %1152 = vmatpush.xpose.msra.mxu0 0.0
        %1153 = vmatpush.xpose.msra.mxu0 0.0
        %1154 = vmatpush.xpose.msra.mxu0 0.0
        %1155 = vmatpush.xpose.msra.mxu0 0.0
        %1156 = vmatpush.xpose.msra.mxu0 0.0
        %1157 = vmatpush.xpose.msra.mxu0 0.0
        %1158 = vmatpush.xpose.msra.mxu0 0.0
        %1159 = vmatpush.xpose.msra.mxu0 %v1142
        %1160 = vmatmul.f32.gmra.mxu0 %v1089
        %v1161 = vpop.f32.mrf.mxu0
        %v1162 = vadd.f32 0.0, %v1161
        %1163 = vmatmul.f32.gmra.mxu0 %v1132
        %v1164 = vpop.f32.mrf.mxu0
        %v1165 = vadd.f32 0.0, %v1164
        %1166 = vmatmul.f32.gmra.mxu0 %v1134
        %v1167 = vpop.f32.mrf.mxu0
        %v1168 = vadd.f32 0.0, %v1167
        %1169 = vmatmul.f32.gmra.mxu0 %v1136
        %v1170 = vpop.f32.mrf.mxu0
        %v1171 = vadd.f32 0.0, %v1170
        %1172 = vmatmul.f32.gmra.mxu0 %v1138
        %v1173 = vpop.f32.mrf.mxu0
        %v1174 = vadd.f32 0.0, %v1173
        %1175 = vmatmul.f32.gmra.mxu0 %v1140
        %v1176 = vpop.f32.mrf.mxu0
        %v1177 = vadd.f32 0.0, %v1176
        %1178 = vdwg.mxu0
        %s1179 = sadd.s32 %s614, 3
        %s1180 = sld [smem:[#allocation11 + %s1179]]
        %v1181 = vstv %s1180
        %v1182 = vadd.f32 %v1165, %v1181
        %v1183 = vmul.f32 %v1182, %v517
        %v1184 = vadd.f32 %v1162, %v1183
        %s1185 = sshra.s32 %s1179, 7
        %s1186 = sand.u32 %s1179, 127
        %s1187 = sadd.s32 %s1185, 1
        %s1188 = smul.u32 %s1187, 128
        %s1189 = sshra.s32 %s1179, 7
        %s1190 = sand.u32 %s1179, 127
        %s1191 = sadd.s32 %s1188, %s1190
        %s1192 = sld [smem:[#allocation11 + %s1191]]
        %v1193 = vstv %s1192
        %v1194 = vadd.f32 %v1168, %v1193
        %v1195 = vmul.f32 %v1194, %v520
        %v1196 = vadd.f32 %v1184, %v1195
        %s1197 = sadd.s32 %s1185, 2
        %s1198 = smul.u32 %s1197, 128
        %s1199 = sadd.s32 %s1198, %s1190
        %s1200 = sld [smem:[#allocation11 + %s1199]]
        %v1201 = vstv %s1200
        %v1202 = vadd.f32 %v1171, %v1201
        %v1203 = vmul.f32 %v1202, %v523
        %v1204 = vadd.f32 %v1196, %v1203
        %s1205 = sadd.s32 %s1185, 3
        %s1206 = smul.u32 %s1205, 128
        %s1207 = sadd.s32 %s1206, %s1190
        %s1208 = sld [smem:[#allocation11 + %s1207]]
        %v1209 = vstv %s1208
        %v1210 = vadd.f32 %v1174, %v1209
        %v1211 = vmul.f32 %v1210, %v526
        %v1212 = vadd.f32 %v1204, %v1211
        %s1213 = sadd.s32 %s1185, 4
        %s1214 = smul.u32 %s1213, 128
        %s1215 = sadd.s32 %s1214, %s1190
        %s1216 = sld [smem:[#allocation11 + %s1215]]
        %v1217 = vstv %s1216
        %v1218 = vadd.f32 %v1177, %v1217
        %v1219 = vmul.f32 %v1218, %v529
        %v1220 = vadd.f32 %v1212, %v1219
        %v1221 = vadd.f32 %v1220, %v657
        %v1222 = vsel %vm532, %v1221, -inf
        %1223 = vmax.xlane.f32.xlu0 %v1222
        %v1224 = vpop.xlane.xlu0 %1223
        %v1225 = vsub.f32 %v1221, %v1224
        %v1226 = vmul.f32 %v1225, 1.442695
        %v1227 = vpow.pop %v1226
        %v1228 = vsel %vm532, %v1227, 0.0
        %1229 = vadd.xlane.f32.xlu0 %v1228
        %v1230 = vpop.xlane.xlu0 %1229
        %v1231 = vrcp.pop %v1230
        %v1232 = vmul.f32 %v1230, %v1231
        %v1233 = vsub.f32 1.0, %v1232
        %v1234 = vmul.f32 %v1231, %v1233
        %v1235 = vadd.f32 %v1231, %v1234
        %vm1236 = vweird.f32 %v1230
        %vm1237 = vweird.f32 %v1231
        %vm1238 = vmor %vm1236, %vm1237
        %v1239 = vsel %vm1238, %v1231, %v1235
        %v1240 = vand.u32 2147483647, %v1230
        %vm1241 = vcmp.eq.f32.partialorder %v1240, 8.507059e+37
        %v1242 = vand.u32 %v1230, 2147483648
        %v1243 = vor.u32 1.1754944e-38, %v1242
        %v1244 = vsel %vm1241, %v1243, %v1239
        %v1245 = vmul.f32 %v1227, %v1244
        %s1246 = scalar_lea.vmem %s475, 24 [#allocation13]
        %1247 = vst.msk [vmem:[%s1246] sm:$0xff] %vm532, %v1245
        %1248 = vrot.lane.b32.xlu0 %v514, 40
        %v1249 = vpop.permute.xlu0 %1248
        %v1252 = vsel %vm532, %v1245, 0
        %1254 = vmatpush.msra.mxu0 0.0
        %1255 = vmatpush.msra.mxu0 0.0
        %1256 = vmatpush.msra.mxu0 0.0
        %1257 = vmatpush.msra.mxu0 0.0
        %1258 = vmatpush.msra.mxu0 0.0
        %1259 = vmatpush.msra.mxu0 0.0
        %1260 = vmatpush.msra.mxu0 0.0
        %1261 = vmatpush.msra.mxu0 0.0
        %1262 = vmatpush.msra.mxu0 0.0
        %1263 = vmatpush.msra.mxu0 0.0
        %1264 = vmatpush.msra.mxu0 0.0
        %1265 = vmatpush.msra.mxu0 0.0
        %1266 = vmatpush.msra.mxu0 0.0
        %1267 = vmatpush.msra.mxu0 0.0
        %1268 = vmatpush.msra.mxu0 0.0
        %1269 = vmatpush.msra.mxu0 %v1249
        %1270 = vmatmul.f32.gmra.mxu0 %v1252
        %v1271 = vpop.f32.mrf.mxu0
        %v1272 = vadd.f32 0.0, %v1271
        %1273 = vdwg.mxu0
        %1275 = vrot.lane.b32.xlu0 %v896, 8
        %v1276 = vpop.permute.xlu0 %1275
        %1279 = vrot.lane.b32.xlu0 %v1083, 16
        %v1280 = vpop.permute.xlu0 %1279
        %1283 = vrot.lane.b32.xlu0 %v1272, 24
        %v1284 = vpop.permute.xlu0 %1283
        %v1286 = vsel %vm532, %v709, %v1276
        %vm1287 = vcmask 130048
        %v1288 = vsel %vm1287, %v1286, %v1280
        %vm1289 = vcmask 195584
        %v1290 = vsel %vm1289, %v1288, %v1284
        %1291 = vst.msk [vmem:[%s468] sm:$0xff] %vm492, %v1290
        %s1292 = sand.u32 %s233, 1
        %s1293 = scalar_lea.sflag [#allocation4], %s1292
        %s1294 = sand.u32 %s233, 1
        %s1295 = smul.addr %s1294, 8
        %s1296 = scalar_lea.vmem [#allocation12], %s1295
        %s1297 = sand.u32 %s261, 1
        %s1298 = scalar_lea.sflag [#allocation14], %s1297
        %s1299 = sand.u32 %s261, 1
        %s1300 = smul.addr %s1299, 32
        %s1301 = scalar_lea.vmem [#allocation13], %s1300
        // Predicated region
        $region69: #{tpu_custom_call.1} parent=47 // pred_check
          %p1302 = pneg %p243
        $region70: #{tpu_custom_call.1} parent=47 // pred_check_branch
          %1304 = sbr.rel (%p1302) target = $region72
        $region71: #{tpu_custom_call.1} parent=47 // pred_region
          %1306 = vsyncadd %s1293, 0
          %s1307 = sadd.s32 %s39, %s38
          %s1308 = smul.addr %s1307, 8
          %s1309 = scalar_lea.hbm %s7, %s1308
          %s1311 = sshll.u32 %s1296, 4
          %s1312 = int_to_ptr.vmem [resolvable:$true] %s1311
          %s1313 = sshll.u32 %s1309, 4
          %s1314 = int_to_ptr.hbm [resolvable:$true] %s1313
          %1316 = dma.vmem_to_hbm [thread:$0]  %s1312, 128, %s1314, %s1293
        $region72: #{tpu_custom_call.1} parent=47 // pred_fallthru
          _
        // Predicated region
        $region73: #{tpu_custom_call.1} parent=47 // pred_check
          %p1317 = pneg %p271
        $region74: #{tpu_custom_call.1} parent=47 // pred_check_branch
          %1319 = sbr.rel (%p1317) target = $region76
        $region75: #{tpu_custom_call.1} parent=47 // pred_region
          %s1320 = smul.u32 4, %s39
          %1322 = vsyncadd %s1298, 0
          %s1323 = smul.addr %s38, 4
          %s1324 = sadd.s32 %s1320, %s1323
          %s1325 = smul.addr %s1324, 8
          %s1326 = scalar_lea.hbm %s8, %s1325
          %s1327 = sshll.u32 %s1301, 4
          %s1328 = int_to_ptr.vmem [resolvable:$true] %s1327
          %s1329 = sshll.u32 %s1326, 4
          %s1330 = int_to_ptr.hbm [resolvable:$true] %s1329
          %1335 = dma.vmem_to_hbm [thread:$0]  %s1328, 512, %s1330, %s1298, 128, 128, 8
        $region76: #{tpu_custom_call.1} parent=47 // pred_fallthru
          _
      $region48: #{tpu_custom_call.1} parent=5 // pred_fallthru
        _
      %p1336 = scmp.le.s32.totalorder 2, %s29
      // Predicated region
      $region77: #{tpu_custom_call.1} parent=5 // pred_check
        %p1337 = pneg %p1336
      $region78: #{tpu_custom_call.1} parent=5 // pred_check_branch
        %1339 = sbr.rel (%p1337) target = $region80
      $region79: #{tpu_custom_call.1} parent=5 // pred_region
        %s1340 = ssub.s32 %s29, 2
        // Predicated region
        $region81: #{tpu_custom_call.1} parent=79 // pred_check
          %p1341 = pneg %p249
        $region82: #{tpu_custom_call.1} parent=79 // pred_check_branch
          %1343 = sbr.rel (%p1341) target = $region84
        $region83: #{tpu_custom_call.1} parent=79 // pred_region
          %s1344 = sand.u32 %s234, 1
          %s1345 = scalar_lea.sflag [#allocation4], %s1344
          %s1346 = sand.u32 %s234, 1
          %s1347 = smul.addr %s1346, 8
          %s1348 = scalar_lea.vmem [#allocation12], %s1347
          %1350 = dma.done %s1345, 128
        $region84: #{tpu_custom_call.1} parent=79 // pred_fallthru
          _
        // Predicated region
        $region85: #{tpu_custom_call.1} parent=79 // pred_check
          %p1351 = pneg %p277
        $region86: #{tpu_custom_call.1} parent=79 // pred_check_branch
          %1353 = sbr.rel (%p1351) target = $region88
        $region87: #{tpu_custom_call.1} parent=79 // pred_region
          %s1354 = sand.u32 %s262, 1
          %s1355 = scalar_lea.sflag [#allocation14], %s1354
          %s1356 = sand.u32 %s262, 1
          %s1357 = smul.addr %s1356, 32
          %s1358 = scalar_lea.vmem [#allocation13], %s1357
          %1360 = dma.done %s1355, 512
        $region88: #{tpu_custom_call.1} parent=79 // pred_fallthru
          _
      $region80: #{tpu_custom_call.1} parent=5 // pred_fallthru
        _
    $region6: #{tpu_custom_call.1} parent=1 // loop_footer
      %s33 = sadd.s32 1, %s29
    $region7: #{tpu_custom_call.1} parent=1 // loop_footer_branch
      %28 = sbr.rel target = $region3
    $region8: #{tpu_custom_call.1} parent=1 // loop_exit
      _
    %1361 = vsyncpa [#allocation3], 1
    %s1362 = scalar_lea.sflag [#allocation3], 1
    %1363 = vsyncpa %s1362, 1
    %1364 = vsyncpa [#allocation7], 1
    %1365 = vsyncpa [#allocation10], 1
    %s1366 = scalar_lea.sflag [#allocation10], 1
    %1367 = vsyncpa %s1366, 1
    %1368 = vsyncpa [#allocation4], 1
    %s1369 = scalar_lea.sflag [#allocation4], 1
    %1370 = vsyncpa %s1369, 1
    %1371 = vsyncpa [#allocation14], 1
    %s1372 = scalar_lea.sflag [#allocation14], 1
    %1373 = vsyncpa %s1372, 1
    %1374 = vsyncpa [#allocation5], 1
    %s1375 = scalar_lea.sflag [#allocation5], 1
    %1376 = vsyncpa %s1375, 1

</llo_original>
